<compile_context>
chip_gen: v7x
topology: tpu7x:2x2x1
jax: 0.10.0
libtpu: 0.0.40
codegen_flags: <defaults>
</compile_context>

<pallas_src>
import jax
import jax.numpy as jnp
from jax.experimental import pallas as pl
from jax.experimental.pallas import tpu as pltpu

LANE = 128   # lane-dense feature padding
SUBLANE = 8  # node-row padding granularity


def _round_up(v, m):
    return (v + m - 1) // m * m


def _graph_block(trail):
    """Per-graph block: leading graph dim squeezed, trailing dims full-extent."""
    nd = len(trail)
    return pl.BlockSpec((None,) + tuple(trail), lambda g: (g,) + (0,) * nd)


def _weight_block(shape):
    """Shared (graph-invariant) block."""
    nd = len(shape)
    return pl.BlockSpec(tuple(shape), lambda g: (0,) * nd)


# ----------------------------- fused Pallas kernel ------------------------------


def _make_fused_kernel(num_layers):
    """Kernel args: adj, x, mask, [wa, wc, wr, b] * num_layers, lin_w, lin_b, out.
    All arrays pre-padded: features to LANE, node rows to a multiple of SUBLANE."""

    def kernel(adj_ref, x_ref, mask_ref, *rest):
        layer_refs = rest[: 4 * num_layers]
        lin_w_ref, lin_b_ref, o_ref = rest[4 * num_layers:]

        adj = adj_ref[...]               # (Np, Np) bf16 (integer edge counts, exact)
        mask = mask_ref[...]             # (Np, 1)  f32, 1.0 for real nodes
        h = x_ref[...] * mask            # (Np, F)  f32, padded rows exactly zero

        # TODO(synk): if num_layers grows beyond a handful, replace this unrolled
        #             Python loop with a grid axis over stacked per-layer weights
        #             to bound VMEM/vreg live ranges.
        for l in range(num_layers):
            wa_ref = layer_refs[4 * l + 0]   # (F, F)
            wc_ref = layer_refs[4 * l + 1]   # (F, F)
            wr_ref = layer_refs[4 * l + 2]   # (F, F)
            b_ref = layer_refs[4 * l + 3]    # (1, F)  b_A + b_C + b_R

            # Aggregate: scatter-add of in-neighbor features == Adj @ h.
            # bf16 operands, f32 accumulation.
            agg = jnp.dot(adj, h.astype(jnp.bfloat16),
                          preferred_element_type=jnp.float32)               # (Np, F)

            # Readout: sum over (real) nodes of this graph, folded into the bias.
            readout = jnp.sum(h, axis=0, keepdims=True)                     # (1, F)
            rbias = b_ref[...] + jnp.dot(
                readout, wr_ref[...], preferred_element_type=jnp.float32)   # (1, F)

            # Two accumulating dots (no lane-axis concat, no extra VMEM buffer).
            pre = (jnp.dot(h, wa_ref[...], preferred_element_type=jnp.float32)
                   + jnp.dot(agg, wc_ref[...], preferred_element_type=jnp.float32)
                   + rbias)
            h = jax.nn.sigmoid(pre) * mask   # re-zero padded rows for the next layer

        logits = (jnp.dot(h, lin_w_ref[...], preferred_element_type=jnp.float32)
                  + lin_b_ref[...])
        o_ref[...] = jax.nn.sigmoid(logits)

    return kernel


# --------------------------- params / graph preparation ----------------------------


def init_params(key, input_dim, hidden_dim, num_classes, f_pad):
    """uniform(-1, 1) init mirroring init_model(); weights zero-padded to (f_pad, f_pad)."""
    params = {"layers": []}
    dims = [input_dim] + list(hidden_dim)
    for l in range(len(hidden_dim)):
        fin, fout = dims[l], dims[l + 1]
        key, *ks = jax.random.split(key, 7)
        wa = jax.random.uniform(ks[0], (fin, fout), jnp.float32, -1.0, 1.0)
        wc = jax.random.uniform(ks[1], (fin, fout), jnp.float32, -1.0, 1.0)
        wr = jax.random.uniform(ks[2], (fin, fout), jnp.float32, -1.0, 1.0)
        ba = jax.random.uniform(ks[3], (1, fout), jnp.float32, -1.0, 1.0)
        bc = jax.random.uniform(ks[4], (1, fout), jnp.float32, -1.0, 1.0)
        br = jax.random.uniform(ks[5], (1, fout), jnp.float32, -1.0, 1.0)

        wa_p = jnp.zeros((f_pad, f_pad), jnp.float32).at[:fin, :fout].set(wa)
        wc_p = jnp.zeros((f_pad, f_pad), jnp.float32).at[:fin, :fout].set(wc)
        wr_p = jnp.zeros((f_pad, f_pad), jnp.float32).at[:fin, :fout].set(wr)
        b_p = jnp.zeros((1, f_pad), jnp.float32).at[:, :fout].set(ba + bc + br)
        params["layers"].append((wa_p, wc_p, wr_p, b_p))

    key, k1, k2 = jax.random.split(key, 3)
    lin_w = jax.random.uniform(k1, (hidden_dim[-1], num_classes), jnp.float32, -1.0, 1.0)
    lin_b = jax.random.uniform(k2, (1, num_classes), jnp.float32, -1.0, 1.0)
    params["lin_w"] = (jnp.zeros((f_pad, f_pad), jnp.float32)
                       .at[: hidden_dim[-1], :num_classes].set(lin_w))
    params["lin_b"] = jnp.zeros((1, f_pad), jnp.float32).at[:, :num_classes].set(lin_b)
    return params


def edge_index_to_adj(edge_index, num_nodes):
    """adj[i, j] = number of edges j -> i (PyG: row 0 = src, row 1 = dst). Built ONCE."""
    src, dst = edge_index[0], edge_index[1]
    adj = jnp.zeros((num_nodes, num_nodes), jnp.float32)
    return adj.at[dst, src].add(1.0)


def prepare_graph_batch(xs, adjs, node_counts, input_dim, n_pad, f_pad):
    """Pads & stacks a batch of graphs ONCE (structure is static across forward calls)."""
    B = len(xs)
    x_p = jnp.zeros((B, n_pad, f_pad), jnp.float32)
    adj_p = jnp.zeros((B, n_pad, n_pad), jnp.float32)
    mask = jnp.zeros((B, n_pad, 1), jnp.float32)
    for g in range(B):
        n = node_counts[g]
        x_p = x_p.at[g, :n, :input_dim].set(xs[g])
        adj_p = adj_p.at[g, :n, :n].set(adjs[g])
        mask = mask.at[g, :n, 0].set(1.0)
    # Small integer edge counts are exact in bf16; halves adjacency DMA bytes.
    return x_p, adj_p.astype(jnp.bfloat16), mask


# --------------------------------- forward builder -------------------------------------


def make_forward(num_layers, n_pad, f_pad, num_graphs):
    kernel = _make_fused_kernel(num_layers)

    in_specs = [
        _graph_block((n_pad, n_pad)),   # adj (bf16)
        _graph_block((n_pad, f_pad)),   # x
        _graph_block((n_pad, 1)),       # mask
    ]
    for _ in range(num_layers):
        in_specs += [_weight_block((f_pad, f_pad))] * 3 + [_weight_block((1, f_pad))]
    in_specs += [_weight_block((f_pad, f_pad)), _weight_block((1, f_pad))]
    out_spec = _graph_block((n_pad, f_pad))

    # Advisory cost estimate for XLA scheduling around the custom call.
    L, Np, F, B = num_layers, n_pad, f_pad, num_graphs
    flops = B * (L * (2 * Np * Np * F + 4 * Np * F * F + 2 * F * F) + 2 * Np * F * F)
    transcend = B * (L + 1) * Np * F
    bytes_acc = (B * Np * Np * 2 + 2 * B * Np * F * 4 + B * Np * 4
                 + (L * (3 * F * F + F) + F * F + F) * 4)
    cost = pl.CostEstimate(flops=flops, transcendentals=transcend,
                           bytes_accessed=bytes_acc)

    @jax.jit
    def forward(params, x_p, adj_p, mask):
        flat = []
        for wa, wc, wr, b in params["layers"]:
            flat += [wa, wc, wr, b]
        inputs = [adj_p, x_p, mask] + flat + [params["lin_w"], params["lin_b"]]

        return pl.pallas_call(
            kernel,
            out_shape=jax.ShapeDtypeStruct((num_graphs, n_pad, f_pad), jnp.float32),
            grid=(num_graphs,),
            in_specs=in_specs,
            out_specs=out_spec,
            compiler_params=pltpu.CompilerParams(
                dimension_semantics=("parallel",),
                vmem_limit_bytes=32 * 1024 * 1024,
            ),
            cost_estimate=cost,
        )(*inputs)

    return forward


# ----------------------------- pure-JAX f32 reference ----------------------------------


def reference_forward(params, x, adj, num_layers, input_dim, hidden_dim, num_classes):
    h = x
    dims = [input_dim] + list(hidden_dim)
    for l in range(num_layers):
        fin, fout = dims[l], dims[l + 1]
        wa_p, wc_p, wr_p, b_p = params["layers"][l]
        wa, wc, wr, b = (wa_p[:fin, :fout], wc_p[:fin, :fout],
                         wr_p[:fin, :fout], b_p[:, :fout])
        agg = adj @ h
        readout = jnp.sum(h, axis=0, keepdims=True)
        h = jax.nn.sigmoid(h @ wa + agg @ wc + readout @ wr + b)
    lin_w = params["lin_w"][: hidden_dim[-1], :num_classes]
    lin_b = params["lin_b"][:, :num_classes]
    return jax.nn.sigmoid(h @ lin_w + lin_b)


# --------------------------------- main -------------------------------------

if __name__ == "__main__":
    key = jax.random.PRNGKey(0)

    num_graphs = 8
    num_nodes = 16
    input_dim = 4
    hidden_dim = [32, 32]          # num_layers = 2
    num_layers = len(hidden_dim)
    num_classes = 2
    num_edges = 40

    f_pad = _round_up(max([input_dim] + hidden_dim + [num_classes, LANE]), LANE)
    n_pad = _round_up(max(num_nodes, SUBLANE), SUBLANE)

    key, k_param = jax.random.split(key)
    params = init_params(k_param, input_dim, hidden_dim, num_classes, f_pad)

    xs, adjs = [], []
    for _ in range(num_graphs):
        key, kf, ks, kd = jax.random.split(key, 4)
        xs.append(jax.random.normal(kf, (num_nodes, input_dim), jnp.float32))
        edge_index = jnp.stack(
            [jax.random.randint(ks, (num_edges,), 0, num_nodes),
             jax.random.randint(kd, (num_edges,), 0, num_nodes)], axis=0)
        adjs.append(edge_index_to_adj(edge_index, num_nodes))

    # Graph structure / features are static across calls -> pad & stack ONCE.
    x_p, adj_p, mask = prepare_graph_batch(
        xs, adjs, [num_nodes] * num_graphs, input_dim, n_pad, f_pad)

    forward = make_forward(num_layers, n_pad, f_pad, num_graphs)
    out_full = jax.block_until_ready(forward(params, x_p, adj_p, mask))
    out = out_full[:, :num_nodes, :num_classes]   # node-level probabilities per graph

    assert out.shape == (num_graphs, num_nodes, num_classes)
    assert bool(jnp.all(jnp.isfinite(out)))
    assert bool(jnp.all((out >= 0.0) & (out <= 1.0)))

    # Relaxed-tolerance check vs. the all-f32 reference (bf16 aggregation rounding).
    max_err = 0.0
    for g in range(num_graphs):
        ref = reference_forward(params, xs[g], adjs[g], num_layers,
                                input_dim, hidden_dim, num_classes)
        max_err = max(max_err, float(jnp.max(jnp.abs(out[g] - ref))))
    assert max_err < 5e-2, f"max abs diff vs f32 reference = {max_err}"

    print("KERNEL_OK")
</pallas_src>

<mosaic_0001>
module attributes {stable_mosaic.version = 11 : i64} {
  func.func @kernel(%arg0: i32, %arg1: memref<1x16x16xbf16, #tpu.memory_space<vmem>>, %arg2: memref<1x16x128xf32, #tpu.memory_space<vmem>>, %arg3: memref<1x16x1xf32, #tpu.memory_space<vmem>>, %arg4: memref<128x128xf32, #tpu.memory_space<vmem>>, %arg5: memref<128x128xf32, #tpu.memory_space<vmem>>, %arg6: memref<128x128xf32, #tpu.memory_space<vmem>>, %arg7: memref<1x128xf32, #tpu.memory_space<vmem>>, %arg8: memref<128x128xf32, #tpu.memory_space<vmem>>, %arg9: memref<128x128xf32, #tpu.memory_space<vmem>>, %arg10: memref<128x128xf32, #tpu.memory_space<vmem>>, %arg11: memref<1x128xf32, #tpu.memory_space<vmem>>, %arg12: memref<128x128xf32, #tpu.memory_space<vmem>>, %arg13: memref<1x128xf32, #tpu.memory_space<vmem>>, %arg14: memref<1x16x128xf32, #tpu.memory_space<vmem>>) attributes {dimension_semantics = [#tpu.dimension_semantics<parallel>], iteration_bounds = array<i64: 8>, scalar_prefetch = 0 : i64, scratch_operands = 0 : i64, tpu.core_type = #tpu.core_type<tc>, window_params = [{transform_indices = @transform_0, window_bounds = array<i64: 1, 16, 16>}, {transform_indices = @transform_1, window_bounds = array<i64: 1, 16, 128>}, {transform_indices = @transform_2, window_bounds = array<i64: 1, 16, 1>}, {pipeline_mode = #tpu.pipeline_mode<synchronous>, transform_indices = @transform_3, window_bounds = array<i64: 128, 128>}, {pipeline_mode = #tpu.pipeline_mode<synchronous>, transform_indices = @transform_4, window_bounds = array<i64: 128, 128>}, {pipeline_mode = #tpu.pipeline_mode<synchronous>, transform_indices = @transform_5, window_bounds = array<i64: 128, 128>}, {pipeline_mode = #tpu.pipeline_mode<synchronous>, transform_indices = @transform_6, window_bounds = array<i64: 1, 128>}, {pipeline_mode = #tpu.pipeline_mode<synchronous>, transform_indices = @transform_7, window_bounds = array<i64: 128, 128>}, {pipeline_mode = #tpu.pipeline_mode<synchronous>, transform_indices = @transform_8, window_bounds = array<i64: 128, 128>}, {pipeline_mode = #tpu.pipeline_mode<synchronous>, transform_indices = @transform_9, window_bounds = array<i64: 128, 128>}, {pipeline_mode = #tpu.pipeline_mode<synchronous>, transform_indices = @transform_10, window_bounds = array<i64: 1, 128>}, {pipeline_mode = #tpu.pipeline_mode<synchronous>, transform_indices = @transform_11, window_bounds = array<i64: 128, 128>}, {pipeline_mode = #tpu.pipeline_mode<synchronous>, transform_indices = @transform_12, window_bounds = array<i64: 1, 128>}, {transform_indices = @transform_13, window_bounds = array<i64: 1, 16, 128>}]} {
    %c0 = arith.constant 0 : index
    %c0_0 = arith.constant 0 : index
    %c0_1 = arith.constant 0 : index
    %0 = vector.load %arg1[%c0, %c0_0, %c0_1] : memref<1x16x16xbf16, #tpu.memory_space<vmem>>, vector<1x16x16xbf16>
    %1 = vector.shape_cast %0 : vector<1x16x16xbf16> to vector<16x16xbf16>
    %c0_2 = arith.constant 0 : index
    %c0_3 = arith.constant 0 : index
    %c0_4 = arith.constant 0 : index
    %2 = vector.load %arg3[%c0_2, %c0_3, %c0_4] : memref<1x16x1xf32, #tpu.memory_space<vmem>>, vector<1x16x1xf32>
    %3 = vector.shape_cast %2 : vector<1x16x1xf32> to vector<16x1xf32>
    %c0_5 = arith.constant 0 : index
    %c0_6 = arith.constant 0 : index
    %c0_7 = arith.constant 0 : index
    %4 = vector.load %arg2[%c0_5, %c0_6, %c0_7] : memref<1x16x128xf32, #tpu.memory_space<vmem>>, vector<1x16x128xf32>
    %5 = vector.shape_cast %4 : vector<1x16x128xf32> to vector<16x128xf32>
    %6 = vector.broadcast %3 : vector<16x1xf32> to vector<16x128xf32>
    %7 = arith.mulf %5, %6 : vector<16x128xf32>
    %8 = arith.truncf %7 : vector<16x128xf32> to vector<16x128xbf16>
    %cst = arith.constant dense<0.000000e+00> : vector<16x128xf32>
    %9 = tpu.matmul %1, %8, %cst {dimension_numbers = #tpu.dot_dimension_numbers<[1], [0], [0], [1], [0, 0, 1, 1], [], []>} : vector<16x16xbf16>, vector<16x128xbf16>, vector<16x128xf32> -> vector<16x128xf32>
    %cst_8 = arith.constant dense<0.000000e+00> : vector<128xf32>
    %10 = vector.multi_reduction <add>, %7, %cst_8 [0] : vector<16x128xf32> to vector<128xf32>
    %11 = vector.shape_cast %10 : vector<128xf32> to vector<1x128xf32>
    %c0_9 = arith.constant 0 : index
    %c0_10 = arith.constant 0 : index
    %12 = vector.load %arg7[%c0_9, %c0_10] : memref<1x128xf32, #tpu.memory_space<vmem>>, vector<1x128xf32>
    %c0_11 = arith.constant 0 : index
    %c0_12 = arith.constant 0 : index
    %13 = vector.load %arg6[%c0_11, %c0_12] : memref<128x128xf32, #tpu.memory_space<vmem>>, vector<128x128xf32>
    %cst_13 = arith.constant dense<0.000000e+00> : vector<1x128xf32>
    %14 = tpu.matmul %11, %13, %cst_13 {dimension_numbers = #tpu.dot_dimension_numbers<[1], [0], [0], [1], [0, 0, 1, 1], [], []>} : vector<1x128xf32>, vector<128x128xf32>, vector<1x128xf32> -> vector<1x128xf32>
    %15 = arith.addf %12, %14 : vector<1x128xf32>
    %c0_14 = arith.constant 0 : index
    %c0_15 = arith.constant 0 : index
    %16 = vector.load %arg4[%c0_14, %c0_15] : memref<128x128xf32, #tpu.memory_space<vmem>>, vector<128x128xf32>
    %cst_16 = arith.constant dense<0.000000e+00> : vector<16x128xf32>
    %17 = tpu.matmul %7, %16, %cst_16 {dimension_numbers = #tpu.dot_dimension_numbers<[1], [0], [0], [1], [0, 0, 1, 1], [], []>} : vector<16x128xf32>, vector<128x128xf32>, vector<16x128xf32> -> vector<16x128xf32>
    %c0_17 = arith.constant 0 : index
    %c0_18 = arith.constant 0 : index
    %18 = vector.load %arg5[%c0_17, %c0_18] : memref<128x128xf32, #tpu.memory_space<vmem>>, vector<128x128xf32>
    %cst_19 = arith.constant dense<0.000000e+00> : vector<16x128xf32>
    %19 = tpu.matmul %9, %18, %cst_19 {dimension_numbers = #tpu.dot_dimension_numbers<[1], [0], [0], [1], [0, 0, 1, 1], [], []>} : vector<16x128xf32>, vector<128x128xf32>, vector<16x128xf32> -> vector<16x128xf32>
    %20 = arith.addf %17, %19 : vector<16x128xf32>
    %21 = vector.broadcast %15 : vector<1x128xf32> to vector<16x128xf32>
    %22 = arith.addf %20, %21 : vector<16x128xf32>
    %23 = arith.negf %22 : vector<16x128xf32>
    %24 = math.exp %23 : vector<16x128xf32>
    %cst_20 = arith.constant 1.000000e+00 : f32
    %25 = vector.broadcast %cst_20 : f32 to vector<16x128xf32>
    %26 = arith.addf %25, %24 : vector<16x128xf32>
    %27 = arith.divf %25, %26 : vector<16x128xf32>
    %28 = vector.broadcast %3 : vector<16x1xf32> to vector<16x128xf32>
    %29 = arith.mulf %27, %28 : vector<16x128xf32>
    %30 = arith.truncf %29 : vector<16x128xf32> to vector<16x128xbf16>
    %cst_21 = arith.constant dense<0.000000e+00> : vector<16x128xf32>
    %31 = tpu.matmul %1, %30, %cst_21 {dimension_numbers = #tpu.dot_dimension_numbers<[1], [0], [0], [1], [0, 0, 1, 1], [], []>} : vector<16x16xbf16>, vector<16x128xbf16>, vector<16x128xf32> -> vector<16x128xf32>
    %cst_22 = arith.constant dense<0.000000e+00> : vector<128xf32>
    %32 = vector.multi_reduction <add>, %29, %cst_22 [0] : vector<16x128xf32> to vector<128xf32>
    %33 = vector.shape_cast %32 : vector<128xf32> to vector<1x128xf32>
    %c0_23 = arith.constant 0 : index
    %c0_24 = arith.constant 0 : index
    %34 = vector.load %arg11[%c0_23, %c0_24] : memref<1x128xf32, #tpu.memory_space<vmem>>, vector<1x128xf32>
    %c0_25 = arith.constant 0 : index
    %c0_26 = arith.constant 0 : index
    %35 = vector.load %arg10[%c0_25, %c0_26] : memref<128x128xf32, #tpu.memory_space<vmem>>, vector<128x128xf32>
    %cst_27 = arith.constant dense<0.000000e+00> : vector<1x128xf32>
    %36 = tpu.matmul %33, %35, %cst_27 {dimension_numbers = #tpu.dot_dimension_numbers<[1], [0], [0], [1], [0, 0, 1, 1], [], []>} : vector<1x128xf32>, vector<128x128xf32>, vector<1x128xf32> -> vector<1x128xf32>
    %37 = arith.addf %34, %36 : vector<1x128xf32>
    %c0_28 = arith.constant 0 : index
    %c0_29 = arith.constant 0 : index
    %38 = vector.load %arg8[%c0_28, %c0_29] : memref<128x128xf32, #tpu.memory_space<vmem>>, vector<128x128xf32>
    %cst_30 = arith.constant dense<0.000000e+00> : vector<16x128xf32>
    %39 = tpu.matmul %29, %38, %cst_30 {dimension_numbers = #tpu.dot_dimension_numbers<[1], [0], [0], [1], [0, 0, 1, 1], [], []>} : vector<16x128xf32>, vector<128x128xf32>, vector<16x128xf32> -> vector<16x128xf32>
    %c0_31 = arith.constant 0 : index
    %c0_32 = arith.constant 0 : index
    %40 = vector.load %arg9[%c0_31, %c0_32] : memref<128x128xf32, #tpu.memory_space<vmem>>, vector<128x128xf32>
    %cst_33 = arith.constant dense<0.000000e+00> : vector<16x128xf32>
    %41 = tpu.matmul %31, %40, %cst_33 {dimension_numbers = #tpu.dot_dimension_numbers<[1], [0], [0], [1], [0, 0, 1, 1], [], []>} : vector<16x128xf32>, vector<128x128xf32>, vector<16x128xf32> -> vector<16x128xf32>
    %42 = arith.addf %39, %41 : vector<16x128xf32>
    %43 = vector.broadcast %37 : vector<1x128xf32> to vector<16x128xf32>
    %44 = arith.addf %42, %43 : vector<16x128xf32>
    %45 = arith.negf %44 : vector<16x128xf32>
    %46 = math.exp %45 : vector<16x128xf32>
    %cst_34 = arith.constant 1.000000e+00 : f32
    %47 = vector.broadcast %cst_34 : f32 to vector<16x128xf32>
    %48 = arith.addf %47, %46 : vector<16x128xf32>
    %49 = arith.divf %47, %48 : vector<16x128xf32>
    %50 = vector.broadcast %3 : vector<16x1xf32> to vector<16x128xf32>
    %51 = arith.mulf %49, %50 : vector<16x128xf32>
    %c0_35 = arith.constant 0 : index
    %c0_36 = arith.constant 0 : index
    %52 = vector.load %arg12[%c0_35, %c0_36] : memref<128x128xf32, #tpu.memory_space<vmem>>, vector<128x128xf32>
    %cst_37 = arith.constant dense<0.000000e+00> : vector<16x128xf32>
    %53 = tpu.matmul %51, %52, %cst_37 {dimension_numbers = #tpu.dot_dimension_numbers<[1], [0], [0], [1], [0, 0, 1, 1], [], []>} : vector<16x128xf32>, vector<128x128xf32>, vector<16x128xf32> -> vector<16x128xf32>
    %c0_38 = arith.constant 0 : index
    %c0_39 = arith.constant 0 : index
    %54 = vector.load %arg13[%c0_38, %c0_39] : memref<1x128xf32, #tpu.memory_space<vmem>>, vector<1x128xf32>
    %55 = vector.broadcast %54 : vector<1x128xf32> to vector<16x128xf32>
    %56 = arith.addf %53, %55 : vector<16x128xf32>
    %57 = arith.negf %56 : vector<16x128xf32>
    %58 = math.exp %57 : vector<16x128xf32>
    %cst_40 = arith.constant 1.000000e+00 : f32
    %59 = vector.broadcast %cst_40 : f32 to vector<16x128xf32>
    %60 = arith.addf %59, %58 : vector<16x128xf32>
    %61 = arith.divf %59, %60 : vector<16x128xf32>
    %c0_41 = arith.constant 0 : index
    %c0_42 = arith.constant 0 : index
    %c0_43 = arith.constant 0 : index
    %62 = vector.load %arg14[%c0_41, %c0_42, %c0_43] : memref<1x16x128xf32, #tpu.memory_space<vmem>>, vector<1x16x128xf32>
    %63 = vector.shape_cast %62 : vector<1x16x128xf32> to vector<16x128xf32>
    %64 = vector.shape_cast %61 : vector<16x128xf32> to vector<1x16x128xf32>
    tpu.vector_store %arg14[%c0_41, %c0_42, %c0_43], %64 {strides = array<i32>} : memref<1x16x128xf32, #tpu.memory_space<vmem>>, vector<1x16x128xf32>,
    return
  }
  func.func @transform_0(%arg0: i32) -> (i32, i32, i32) {
    %c0_i32 = arith.constant 0 : i32
    %c0_i32_0 = arith.constant 0 : i32
    %c0_i32_1 = arith.constant 0 : i32
    return %arg0, %c0_i32, %c0_i32_0 : i32, i32, i32
  }
  func.func @transform_1(%arg0: i32) -> (i32, i32, i32) {
    %c0_i32 = arith.constant 0 : i32
    %c0_i32_0 = arith.constant 0 : i32
    %c0_i32_1 = arith.constant 0 : i32
    return %arg0, %c0_i32, %c0_i32_0 : i32, i32, i32
  }
  func.func @transform_2(%arg0: i32) -> (i32, i32, i32) {
    %c0_i32 = arith.constant 0 : i32
    %c0_i32_0 = arith.constant 0 : i32
    %c0_i32_1 = arith.constant 0 : i32
    return %arg0, %c0_i32, %c0_i32_0 : i32, i32, i32
  }
  func.func @transform_3(%arg0: i32) -> (i32, i32) {
    %c0_i32 = arith.constant 0 : i32
    %c0_i32_0 = arith.constant 0 : i32
    %c0_i32_1 = arith.constant 0 : i32
    return %c0_i32, %c0_i32_0 : i32, i32
  }
  func.func @transform_4(%arg0: i32) -> (i32, i32) {
    %c0_i32 = arith.constant 0 : i32
    %c0_i32_0 = arith.constant 0 : i32
    %c0_i32_1 = arith.constant 0 : i32
    return %c0_i32, %c0_i32_0 : i32, i32
  }
  func.func @transform_5(%arg0: i32) -> (i32, i32) {
    %c0_i32 = arith.constant 0 : i32
    %c0_i32_0 = arith.constant 0 : i32
    %c0_i32_1 = arith.constant 0 : i32
    return %c0_i32, %c0_i32_0 : i32, i32
  }
  func.func @transform_6(%arg0: i32) -> (i32, i32) {
    %c0_i32 = arith.constant 0 : i32
    %c0_i32_0 = arith.constant 0 : i32
    %c0_i32_1 = arith.constant 0 : i32
    return %c0_i32, %c0_i32_0 : i32, i32
  }
  func.func @transform_7(%arg0: i32) -> (i32, i32) {
    %c0_i32 = arith.constant 0 : i32
    %c0_i32_0 = arith.constant 0 : i32
    %c0_i32_1 = arith.constant 0 : i32
    return %c0_i32, %c0_i32_0 : i32, i32
  }
  func.func @transform_8(%arg0: i32) -> (i32, i32) {
    %c0_i32 = arith.constant 0 : i32
    %c0_i32_0 = arith.constant 0 : i32
    %c0_i32_1 = arith.constant 0 : i32
    return %c0_i32, %c0_i32_0 : i32, i32
  }
  func.func @transform_9(%arg0: i32) -> (i32, i32) {
    %c0_i32 = arith.constant 0 : i32
    %c0_i32_0 = arith.constant 0 : i32
    %c0_i32_1 = arith.constant 0 : i32
    return %c0_i32, %c0_i32_0 : i32, i32
  }
  func.func @transform_10(%arg0: i32) -> (i32, i32) {
    %c0_i32 = arith.constant 0 : i32
    %c0_i32_0 = arith.constant 0 : i32
    %c0_i32_1 = arith.constant 0 : i32
    return %c0_i32, %c0_i32_0 : i32, i32
  }
  func.func @transform_11(%arg0: i32) -> (i32, i32) {
    %c0_i32 = arith.constant 0 : i32
    %c0_i32_0 = arith.constant 0 : i32
    %c0_i32_1 = arith.constant 0 : i32
    return %c0_i32, %c0_i32_0 : i32, i32
  }
  func.func @transform_12(%arg0: i32) -> (i32, i32) {
    %c0_i32 = arith.constant 0 : i32
    %c0_i32_0 = arith.constant 0 : i32
    %c0_i32_1 = arith.constant 0 : i32
    return %c0_i32, %c0_i32_0 : i32, i32
  }
  func.func @transform_13(%arg0: i32) -> (i32, i32, i32) {
    %c0_i32 = arith.constant 0 : i32
    %c0_i32_0 = arith.constant 0 : i32
    %c0_i32_1 = arith.constant 0 : i32
    return %arg0, %c0_i32, %c0_i32_0 : i32, i32, i32
  }
}

</mosaic_0001>

<llo_original>
// kernel: forward.1
$region0: #{forward.1}
  #allocation0 [shape = 'u32[]', space=smem, size = 0x4, offset = 0x4, fixed_abs, tag = 'smem constant byte address 0x4 - core index']
  #allocation1 [shape = 'u32[144,128]{1,0:T(1,128)}', space=vmem, size = 0x12000, scoped, tag = 'internal scratch']
  %s0 = inlined_call_operand.hbm [shape: bf16[8,16,16], index: 0, kind: input, shape index: {}]
  %s1 = inlined_call_operand.vmem [shape: f32[8,16,128], index: 1, kind: input, shape index: {}]
  %s2 = inlined_call_operand.vmem [shape: f32[8,16,1], index: 2, kind: input, shape index: {}]
  %s3 = inlined_call_operand.hbm [shape: f32[128,128], index: 3, kind: input, shape index: {}]
  %s4 = inlined_call_operand.hbm [shape: f32[128,128], index: 4, kind: input, shape index: {}]
  %s5 = inlined_call_operand.hbm [shape: f32[128,128], index: 5, kind: input, shape index: {}]
  %s6 = inlined_call_operand.vmem [shape: f32[1,128], index: 6, kind: input, shape index: {}]
  %s7 = inlined_call_operand.hbm [shape: f32[128,128], index: 7, kind: input, shape index: {}]
  %s8 = inlined_call_operand.hbm [shape: f32[128,128], index: 8, kind: input, shape index: {}]
  %s9 = inlined_call_operand.hbm [shape: f32[128,128], index: 9, kind: input, shape index: {}]
  %s10 = inlined_call_operand.vmem [shape: f32[1,128], index: 10, kind: input, shape index: {}]
  %s11 = inlined_call_operand.hbm [shape: f32[128,128], index: 11, kind: input, shape index: {}]
  %s12 = inlined_call_operand.vmem [shape: f32[1,128], index: 12, kind: input, shape index: {}]
  %s13 = inlined_call_operand.hbm [shape: f32[8,16,128], index: 13, kind: output, shape index: {}]
  %s14 = sld [smem:[#allocation0]]
  $region117: #{forward.1} parent=0
    _
  %s16 = ssub.s32 1, %s14
  %s17 = scalar_select 0, %s16, %s14
  $region1: #{forward.1} parent=0
    #allocation2 [shape = 'u8[8192]{0}', space=vmem, size = 0x2000, scoped, tag = 'input window, operand 0']
    #allocation3 [shape = 's32[2]{0}', space=sflag, size = 0x8, scoped, tag = 'scoped memory for forward.1']
    #allocation4 [shape = 's32[2]{0}', space=sflag, size = 0x8, scoped, tag = 'scoped memory for forward.1']
    #allocation5 [shape = 'u8[65536]{0}', space=vmem, size = 0x10000, scoped, tag = 'input window, operand 3, single buffered']
    #allocation6 [shape = 's32[1]{0}', space=sflag, size = 0x4, scoped, tag = 'scoped memory for forward.1']
    #allocation7 [shape = 'u8[65536]{0}', space=vmem, size = 0x10000, scoped, tag = 'input window, operand 4, single buffered']
    #allocation8 [shape = 'u8[65536]{0}', space=vmem, size = 0x10000, scoped, tag = 'input window, operand 5, single buffered']
    #allocation9 [shape = 's32[1]{0}', space=sflag, size = 0x4, scoped, tag = 'scoped memory for forward.1']
    #allocation10 [shape = 'u8[65536]{0}', space=vmem, size = 0x10000, scoped, tag = 'input window, operand 7, single buffered']
    #allocation11 [shape = 'u8[65536]{0}', space=vmem, size = 0x10000, scoped, tag = 'input window, operand 8, single buffered']
    #allocation12 [shape = 's32[1]{0}', space=sflag, size = 0x4, scoped, tag = 'scoped memory for forward.1']
    #allocation13 [shape = 'u8[65536]{0}', space=vmem, size = 0x10000, scoped, tag = 'input window, operand 9, single buffered']
    #allocation14 [shape = 'u8[65536]{0}', space=vmem, size = 0x10000, scoped, tag = 'input window, operand 11, single buffered']
    #allocation15 [shape = 's32[1]{0}', space=sflag, size = 0x4, scoped, tag = 'scoped memory for forward.1']
    #allocation16 [shape = 'u8[16384]{0}', space=vmem, size = 0x4000, scoped, tag = 'output window, operand 0']
    %18 = vsyncpa [#allocation3], 0
    %s19 = scalar_lea.sflag [#allocation3], 1
    %20 = vsyncpa %s19, 0
    %21 = vsyncpa [#allocation6], 0
    %22 = vsyncpa [#allocation9], 0
    %23 = vsyncpa [#allocation12], 0
    %24 = vsyncpa [#allocation15], 0
    %25 = vsyncpa [#allocation4], 0
    %s26 = scalar_lea.sflag [#allocation4], 1
    %27 = vsyncpa %s26, 0
    loop: start=0, step=1, limit=10
    $region2: #{forward.1} parent=1 // loop_pre_header
      _
    $region3: #{forward.1} parent=1 // loop_header
      %s29 = sphi 0, %s33
      %p30 = scmp.ge.s32.totalorder %s29, 10
      %s39 = sphi 0, %s41
      %s42 = sphi 0, %s39
      %s43 = sphi 0, %s42
      %s59 = sphi 0, %s43
      %s65 = sphi 0, %s67
      %s68 = sphi 0, %s65
      %s69 = sphi 0, %s68
      %s85 = sphi 0, %s69
      %s91 = sphi 0, %s93
      %s94 = sphi 0, %s91
      %s95 = sphi 0, %s94
      %s111 = sphi 0, %s95
      %s115 = sphi 0, %s115
      %s117 = sphi 0, %s115
      %s118 = sphi 0, %s117
      %s132 = sphi 0, %s118
      %s136 = sphi 0, %s136
      %s138 = sphi 0, %s136
      %s139 = sphi 0, %s138
      %s153 = sphi 0, %s139
      %s157 = sphi 0, %s157
      %s159 = sphi 0, %s157
      %s160 = sphi 0, %s159
      %s174 = sphi 0, %s160
      %s178 = sphi 0, %s178
      %s180 = sphi 0, %s178
      %s181 = sphi 0, %s180
      %s195 = sphi 0, %s181
      %s199 = sphi 0, %s199
      %s201 = sphi 0, %s199
      %s202 = sphi 0, %s201
      %s216 = sphi 0, %s202
      %s220 = sphi 0, %s220
      %s222 = sphi 0, %s220
      %s223 = sphi 0, %s222
      %s237 = sphi 0, %s223
      %s241 = sphi 0, %s241
      %s243 = sphi 0, %s241
      %s244 = sphi 0, %s243
      %s258 = sphi 0, %s244
      %s262 = sphi 0, %s262
      %s264 = sphi 0, %s262
      %s265 = sphi 0, %s264
      %s279 = sphi 0, %s265
      %s283 = sphi 0, %s283
      %s285 = sphi 0, %s283
      %s286 = sphi 0, %s285
      %s300 = sphi 0, %s286
      %s304 = sphi 0, %s304
      %s306 = sphi 0, %s304
      %s307 = sphi 0, %s306
      %s321 = sphi 0, %s307
      %s327 = sphi 0, %s329
      %s330 = sphi 0, %s327
      %s331 = sphi 0, %s330
      %s347 = sphi 0, %s331
    $region4: #{forward.1} parent=1 // loop_header_branch
      %32 = sbr.rel (%p30) target = $region8
    $region5: #{forward.1} parent=1 // loop_body
      %s34 = ssub.s32 %s29, 1
      %s35 = ssub.s32 %s29, 2
      %s36 = sadd.s32 %s29, 1
      %s37 = ssub.s32 %s29, %s36
      %p38 = scmp.eq.s32.totalorder %s37, 0
      %s40 = sadd.s32 %s39, 1
      %s41 = scalar_select %p38, %s39, %s40
      %p44 = pneg %p38
      %p45 = scmp.eq.s32.totalorder %s29, 7
      %p46 = por %p44, %p45
      %p47 = scmp.ne.s32.totalorder %s39, %s42
      %p48 = scmp.eq.s32.totalorder %s29, 0
      %p49 = por %p47, %p48
      %p50 = scmp.ne.s32.totalorder %s39, %s42
      %p51 = scmp.eq.s32.totalorder %s34, 7
      %p52 = por %p50, %p51
      %p53 = scmp.ne.s32.totalorder %s42, %s43
      %p54 = scmp.eq.s32.totalorder %s34, 0
      %p55 = por %p53, %p54
      %p56 = scmp.ne.s32.totalorder %s42, %s43
      %p57 = scmp.eq.s32.totalorder %s35, 7
      %p58 = por %p56, %p57
      %p60 = scmp.ne.s32.totalorder %s43, %s59
      %p61 = scmp.eq.s32.totalorder %s35, 0
      %p62 = por %p60, %p61
      %s63 = ssub.s32 %s29, %s36
      %p64 = scmp.eq.s32.totalorder %s63, 0
      %s66 = sadd.s32 %s65, 1
      %s67 = scalar_select %p64, %s65, %s66
      %p70 = pneg %p64
      %p71 = scmp.eq.s32.totalorder %s29, 7
      %p72 = por %p70, %p71
      %p73 = scmp.ne.s32.totalorder %s65, %s68
      %p74 = scmp.eq.s32.totalorder %s29, 0
      %p75 = por %p73, %p74
      %p76 = scmp.ne.s32.totalorder %s65, %s68
      %p77 = scmp.eq.s32.totalorder %s34, 7
      %p78 = por %p76, %p77
      %p79 = scmp.ne.s32.totalorder %s68, %s69
      %p80 = scmp.eq.s32.totalorder %s34, 0
      %p81 = por %p79, %p80
      %p82 = scmp.ne.s32.totalorder %s68, %s69
      %p83 = scmp.eq.s32.totalorder %s35, 7
      %p84 = por %p82, %p83
      %p86 = scmp.ne.s32.totalorder %s69, %s85
      %p87 = scmp.eq.s32.totalorder %s35, 0
      %p88 = por %p86, %p87
      %s89 = ssub.s32 %s29, %s36
      %p90 = scmp.eq.s32.totalorder %s89, 0
      %s92 = sadd.s32 %s91, 1
      %s93 = scalar_select %p90, %s91, %s92
      %p96 = pneg %p90
      %p97 = scmp.eq.s32.totalorder %s29, 7
      %p98 = por %p96, %p97
      %p99 = scmp.ne.s32.totalorder %s91, %s94
      %p100 = scmp.eq.s32.totalorder %s29, 0
      %p101 = por %p99, %p100
      %p102 = scmp.ne.s32.totalorder %s91, %s94
      %p103 = scmp.eq.s32.totalorder %s34, 7
      %p104 = por %p102, %p103
      %p105 = scmp.ne.s32.totalorder %s94, %s95
      %p106 = scmp.eq.s32.totalorder %s34, 0
      %p107 = por %p105, %p106
      %p108 = scmp.ne.s32.totalorder %s94, %s95
      %p109 = scmp.eq.s32.totalorder %s35, 7
      %p110 = por %p108, %p109
      %p112 = scmp.ne.s32.totalorder %s95, %s111
      %p113 = scmp.eq.s32.totalorder %s35, 0
      %p114 = por %p112, %p113
      %s116 = sadd.s32 %s115, 1
      %p119 = scmp.eq.s32.totalorder %s29, 7
      %p120 = scmp.ne.s32.totalorder %s115, %s117
      %p121 = scmp.eq.s32.totalorder %s29, 0
      %p122 = por %p120, %p121
      %p123 = scmp.ne.s32.totalorder %s115, %s117
      %p124 = scmp.eq.s32.totalorder %s34, 7
      %p125 = por %p123, %p124
      %p126 = scmp.ne.s32.totalorder %s117, %s118
      %p127 = scmp.eq.s32.totalorder %s34, 0
      %p128 = por %p126, %p127
      %p129 = scmp.ne.s32.totalorder %s117, %s118
      %p130 = scmp.eq.s32.totalorder %s35, 7
      %p131 = por %p129, %p130
      %p133 = scmp.ne.s32.totalorder %s118, %s132
      %p134 = scmp.eq.s32.totalorder %s35, 0
      %p135 = por %p133, %p134
      %s137 = sadd.s32 %s136, 1
      %p140 = scmp.eq.s32.totalorder %s29, 7
      %p141 = scmp.ne.s32.totalorder %s136, %s138
      %p142 = scmp.eq.s32.totalorder %s29, 0
      %p143 = por %p141, %p142
      %p144 = scmp.ne.s32.totalorder %s136, %s138
      %p145 = scmp.eq.s32.totalorder %s34, 7
      %p146 = por %p144, %p145
      %p147 = scmp.ne.s32.totalorder %s138, %s139
      %p148 = scmp.eq.s32.totalorder %s34, 0
      %p149 = por %p147, %p148
      %p150 = scmp.ne.s32.totalorder %s138, %s139
      %p151 = scmp.eq.s32.totalorder %s35, 7
      %p152 = por %p150, %p151
      %p154 = scmp.ne.s32.totalorder %s139, %s153
      %p155 = scmp.eq.s32.totalorder %s35, 0
      %p156 = por %p154, %p155
      %s158 = sadd.s32 %s157, 1
      %p161 = scmp.eq.s32.totalorder %s29, 7
      %p162 = scmp.ne.s32.totalorder %s157, %s159
      %p163 = scmp.eq.s32.totalorder %s29, 0
      %p164 = por %p162, %p163
      %p165 = scmp.ne.s32.totalorder %s157, %s159
      %p166 = scmp.eq.s32.totalorder %s34, 7
      %p167 = por %p165, %p166
      %p168 = scmp.ne.s32.totalorder %s159, %s160
      %p169 = scmp.eq.s32.totalorder %s34, 0
      %p170 = por %p168, %p169
      %p171 = scmp.ne.s32.totalorder %s159, %s160
      %p172 = scmp.eq.s32.totalorder %s35, 7
      %p173 = por %p171, %p172
      %p175 = scmp.ne.s32.totalorder %s160, %s174
      %p176 = scmp.eq.s32.totalorder %s35, 0
      %p177 = por %p175, %p176
      %s179 = sadd.s32 %s178, 1
      %p182 = scmp.eq.s32.totalorder %s29, 7
      %p183 = scmp.ne.s32.totalorder %s178, %s180
      %p184 = scmp.eq.s32.totalorder %s29, 0
      %p185 = por %p183, %p184
      %p186 = scmp.ne.s32.totalorder %s178, %s180
      %p187 = scmp.eq.s32.totalorder %s34, 7
      %p188 = por %p186, %p187
      %p189 = scmp.ne.s32.totalorder %s180, %s181
      %p190 = scmp.eq.s32.totalorder %s34, 0
      %p191 = por %p189, %p190
      %p192 = scmp.ne.s32.totalorder %s180, %s181
      %p193 = scmp.eq.s32.totalorder %s35, 7
      %p194 = por %p192, %p193
      %p196 = scmp.ne.s32.totalorder %s181, %s195
      %p197 = scmp.eq.s32.totalorder %s35, 0
      %p198 = por %p196, %p197
      %s200 = sadd.s32 %s199, 1
      %p203 = scmp.eq.s32.totalorder %s29, 7
      %p204 = scmp.ne.s32.totalorder %s199, %s201
      %p205 = scmp.eq.s32.totalorder %s29, 0
      %p206 = por %p204, %p205
      %p207 = scmp.ne.s32.totalorder %s199, %s201
      %p208 = scmp.eq.s32.totalorder %s34, 7
      %p209 = por %p207, %p208
      %p210 = scmp.ne.s32.totalorder %s201, %s202
      %p211 = scmp.eq.s32.totalorder %s34, 0
      %p212 = por %p210, %p211
      %p213 = scmp.ne.s32.totalorder %s201, %s202
      %p214 = scmp.eq.s32.totalorder %s35, 7
      %p215 = por %p213, %p214
      %p217 = scmp.ne.s32.totalorder %s202, %s216
      %p218 = scmp.eq.s32.totalorder %s35, 0
      %p219 = por %p217, %p218
      %s221 = sadd.s32 %s220, 1
      %p224 = scmp.eq.s32.totalorder %s29, 7
      %p225 = scmp.ne.s32.totalorder %s220, %s222
      %p226 = scmp.eq.s32.totalorder %s29, 0
      %p227 = por %p225, %p226
      %p228 = scmp.ne.s32.totalorder %s220, %s222
      %p229 = scmp.eq.s32.totalorder %s34, 7
      %p230 = por %p228, %p229
      %p231 = scmp.ne.s32.totalorder %s222, %s223
      %p232 = scmp.eq.s32.totalorder %s34, 0
      %p233 = por %p231, %p232
      %p234 = scmp.ne.s32.totalorder %s222, %s223
      %p235 = scmp.eq.s32.totalorder %s35, 7
      %p236 = por %p234, %p235
      %p238 = scmp.ne.s32.totalorder %s223, %s237
      %p239 = scmp.eq.s32.totalorder %s35, 0
      %p240 = por %p238, %p239
      %s242 = sadd.s32 %s241, 1
      %p245 = scmp.eq.s32.totalorder %s29, 7
      %p246 = scmp.ne.s32.totalorder %s241, %s243
      %p247 = scmp.eq.s32.totalorder %s29, 0
      %p248 = por %p246, %p247
      %p249 = scmp.ne.s32.totalorder %s241, %s243
      %p250 = scmp.eq.s32.totalorder %s34, 7
      %p251 = por %p249, %p250
      %p252 = scmp.ne.s32.totalorder %s243, %s244
      %p253 = scmp.eq.s32.totalorder %s34, 0
      %p254 = por %p252, %p253
      %p255 = scmp.ne.s32.totalorder %s243, %s244
      %p256 = scmp.eq.s32.totalorder %s35, 7
      %p257 = por %p255, %p256
      %p259 = scmp.ne.s32.totalorder %s244, %s258
      %p260 = scmp.eq.s32.totalorder %s35, 0
      %p261 = por %p259, %p260
      %s263 = sadd.s32 %s262, 1
      %p266 = scmp.eq.s32.totalorder %s29, 7
      %p267 = scmp.ne.s32.totalorder %s262, %s264
      %p268 = scmp.eq.s32.totalorder %s29, 0
      %p269 = por %p267, %p268
      %p270 = scmp.ne.s32.totalorder %s262, %s264
      %p271 = scmp.eq.s32.totalorder %s34, 7
      %p272 = por %p270, %p271
      %p273 = scmp.ne.s32.totalorder %s264, %s265
      %p274 = scmp.eq.s32.totalorder %s34, 0
      %p275 = por %p273, %p274
      %p276 = scmp.ne.s32.totalorder %s264, %s265
      %p277 = scmp.eq.s32.totalorder %s35, 7
      %p278 = por %p276, %p277
      %p280 = scmp.ne.s32.totalorder %s265, %s279
      %p281 = scmp.eq.s32.totalorder %s35, 0
      %p282 = por %p280, %p281
      %s284 = sadd.s32 %s283, 1
      %p287 = scmp.eq.s32.totalorder %s29, 7
      %p288 = scmp.ne.s32.totalorder %s283, %s285
      %p289 = scmp.eq.s32.totalorder %s29, 0
      %p290 = por %p288, %p289
      %p291 = scmp.ne.s32.totalorder %s283, %s285
      %p292 = scmp.eq.s32.totalorder %s34, 7
      %p293 = por %p291, %p292
      %p294 = scmp.ne.s32.totalorder %s285, %s286
      %p295 = scmp.eq.s32.totalorder %s34, 0
      %p296 = por %p294, %p295
      %p297 = scmp.ne.s32.totalorder %s285, %s286
      %p298 = scmp.eq.s32.totalorder %s35, 7
      %p299 = por %p297, %p298
      %p301 = scmp.ne.s32.totalorder %s286, %s300
      %p302 = scmp.eq.s32.totalorder %s35, 0
      %p303 = por %p301, %p302
      %s305 = sadd.s32 %s304, 1
      %p308 = scmp.eq.s32.totalorder %s29, 7
      %p309 = scmp.ne.s32.totalorder %s304, %s306
      %p310 = scmp.eq.s32.totalorder %s29, 0
      %p311 = por %p309, %p310
      %p312 = scmp.ne.s32.totalorder %s304, %s306
      %p313 = scmp.eq.s32.totalorder %s34, 7
      %p314 = por %p312, %p313
      %p315 = scmp.ne.s32.totalorder %s306, %s307
      %p316 = scmp.eq.s32.totalorder %s34, 0
      %p317 = por %p315, %p316
      %p318 = scmp.ne.s32.totalorder %s306, %s307
      %p319 = scmp.eq.s32.totalorder %s35, 7
      %p320 = por %p318, %p319
      %p322 = scmp.ne.s32.totalorder %s307, %s321
      %p323 = scmp.eq.s32.totalorder %s35, 0
      %p324 = por %p322, %p323
      %s325 = ssub.s32 %s29, %s36
      %p326 = scmp.eq.s32.totalorder %s325, 0
      %s328 = sadd.s32 %s327, 1
      %s329 = scalar_select %p326, %s327, %s328
      %p332 = pneg %p326
      %p333 = scmp.eq.s32.totalorder %s29, 7
      %p334 = por %p332, %p333
      %p335 = scmp.ne.s32.totalorder %s327, %s330
      %p336 = scmp.eq.s32.totalorder %s29, 0
      %p337 = por %p335, %p336
      %p338 = scmp.ne.s32.totalorder %s327, %s330
      %p339 = scmp.eq.s32.totalorder %s34, 7
      %p340 = por %p338, %p339
      %p341 = scmp.ne.s32.totalorder %s330, %s331
      %p342 = scmp.eq.s32.totalorder %s34, 0
      %p343 = por %p341, %p342
      %p344 = scmp.ne.s32.totalorder %s330, %s331
      %p345 = scmp.eq.s32.totalorder %s35, 7
      %p346 = por %p344, %p345
      %p348 = scmp.ne.s32.totalorder %s331, %s347
      %p349 = scmp.eq.s32.totalorder %s35, 0
      %p350 = por %p348, %p349
      %p351 = scmp.le.s32.totalorder 1, %s29
      %p352 = scmp.lt.s32.totalorder %s29, 9
      %p353 = pnand %p351, %p352
      %p354 = pneg %p353
      // Predicated region
      $region9: #{forward.1} parent=5 // pred_check
        _
      $region10: #{forward.1} parent=5 // pred_check_branch
        %356 = sbr.rel (%p353) target = $region12
      $region11: #{forward.1} parent=5 // pred_region
        %s357 = ssub.s32 %s29, 1
        // Predicated region
        $region13: #{forward.1} parent=11 // pred_check
          %p358 = pneg %p128
        $region14: #{forward.1} parent=11 // pred_check_branch
          %360 = sbr.rel (%p358) target = $region16
        $region15: #{forward.1} parent=11 // pred_region
          %s362 = ssub.s32 2048, 2048
          %363 = vsyncadd [#allocation6], %s362
          %s364 = sshll.u32 [#allocation5], 4
          %s365 = int_to_ptr.vmem [resolvable:$true] %s364
          %370 = dma.hbm_to_vmem [thread:$0]  %s3, 2048, %s365, [#allocation6], 128, 128, 8
        $region16: #{forward.1} parent=11 // pred_fallthru
          _
        // Predicated region
        $region17: #{forward.1} parent=11 // pred_check
          %p371 = pneg %p149
        $region18: #{forward.1} parent=11 // pred_check_branch
          %373 = sbr.rel (%p371) target = $region20
        $region19: #{forward.1} parent=11 // pred_region
          %s375 = ssub.s32 2048, 2048
          %376 = vsyncadd [#allocation6], %s375
          %s377 = sshll.u32 [#allocation7], 4
          %s378 = int_to_ptr.vmem [resolvable:$true] %s377
          %383 = dma.hbm_to_vmem [thread:$0]  %s4, 2048, %s378, [#allocation6], 128, 128, 8
        $region20: #{forward.1} parent=11 // pred_fallthru
          _
        // Predicated region
        $region21: #{forward.1} parent=11 // pred_check
          %p384 = pneg %p170
        $region22: #{forward.1} parent=11 // pred_check_branch
          %386 = sbr.rel (%p384) target = $region24
        $region23: #{forward.1} parent=11 // pred_region
          %s388 = ssub.s32 2048, 2048
          %389 = vsyncadd [#allocation9], %s388
          %s390 = sshll.u32 [#allocation8], 4
          %s391 = int_to_ptr.vmem [resolvable:$true] %s390
          %396 = dma.hbm_to_vmem [thread:$0]  %s5, 2048, %s391, [#allocation9], 128, 128, 8
        $region24: #{forward.1} parent=11 // pred_fallthru
          _
        // Predicated region
        $region25: #{forward.1} parent=11 // pred_check
          %p397 = pneg %p191
        $region26: #{forward.1} parent=11 // pred_check_branch
          %399 = sbr.rel (%p397) target = $region28
        $region27: #{forward.1} parent=11 // pred_region
          _
        $region28: #{forward.1} parent=11 // pred_fallthru
          _
        // Predicated region
        $region29: #{forward.1} parent=11 // pred_check
          %p400 = pneg %p212
        $region30: #{forward.1} parent=11 // pred_check_branch
          %402 = sbr.rel (%p400) target = $region32
        $region31: #{forward.1} parent=11 // pred_region
          %s404 = ssub.s32 2048, 2048
          %405 = vsyncadd [#allocation9], %s404
          %s406 = sshll.u32 [#allocation10], 4
          %s407 = int_to_ptr.vmem [resolvable:$true] %s406
          %412 = dma.hbm_to_vmem [thread:$0]  %s7, 2048, %s407, [#allocation9], 128, 128, 8
        $region32: #{forward.1} parent=11 // pred_fallthru
          _
        // Predicated region
        $region33: #{forward.1} parent=11 // pred_check
          %p413 = pneg %p233
        $region34: #{forward.1} parent=11 // pred_check_branch
          %415 = sbr.rel (%p413) target = $region36
        $region35: #{forward.1} parent=11 // pred_region
          %s417 = ssub.s32 2048, 2048
          %418 = vsyncadd [#allocation12], %s417
          %s419 = sshll.u32 [#allocation11], 4
          %s420 = int_to_ptr.vmem [resolvable:$true] %s419
          %425 = dma.hbm_to_vmem [thread:$0]  %s8, 2048, %s420, [#allocation12], 128, 128, 8
        $region36: #{forward.1} parent=11 // pred_fallthru
          _
        // Predicated region
        $region37: #{forward.1} parent=11 // pred_check
          %p426 = pneg %p254
        $region38: #{forward.1} parent=11 // pred_check_branch
          %428 = sbr.rel (%p426) target = $region40
        $region39: #{forward.1} parent=11 // pred_region
          %s430 = ssub.s32 2048, 2048
          %431 = vsyncadd [#allocation12], %s430
          %s432 = sshll.u32 [#allocation13], 4
          %s433 = int_to_ptr.vmem [resolvable:$true] %s432
          %438 = dma.hbm_to_vmem [thread:$0]  %s9, 2048, %s433, [#allocation12], 128, 128, 8
        $region40: #{forward.1} parent=11 // pred_fallthru
          _
        // Predicated region
        $region41: #{forward.1} parent=11 // pred_check
          %p439 = pneg %p275
        $region42: #{forward.1} parent=11 // pred_check_branch
          %441 = sbr.rel (%p439) target = $region44
        $region43: #{forward.1} parent=11 // pred_region
          _
        $region44: #{forward.1} parent=11 // pred_fallthru
          _
        // Predicated region
        $region45: #{forward.1} parent=11 // pred_check
          %p442 = pneg %p296
        $region46: #{forward.1} parent=11 // pred_check_branch
          %444 = sbr.rel (%p442) target = $region48
        $region47: #{forward.1} parent=11 // pred_region
          %s446 = ssub.s32 2048, 2048
          %447 = vsyncadd [#allocation15], %s446
          %s448 = sshll.u32 [#allocation14], 4
          %s449 = int_to_ptr.vmem [resolvable:$true] %s448
          %454 = dma.hbm_to_vmem [thread:$0]  %s11, 2048, %s449, [#allocation15], 128, 128, 8
        $region48: #{forward.1} parent=11 // pred_fallthru
          _
        // Predicated region
        $region49: #{forward.1} parent=11 // pred_check
          %p455 = pneg %p317
        $region50: #{forward.1} parent=11 // pred_check_branch
          %457 = sbr.rel (%p455) target = $region52
        $region51: #{forward.1} parent=11 // pred_region
          _
        $region52: #{forward.1} parent=11 // pred_fallthru
          _
      $region12: #{forward.1} parent=5 // pred_fallthru
        _
      %p458 = scmp.lt.s32.totalorder %s29, 8
      // Predicated region
      $region53: #{forward.1} parent=5 // pred_check
        %p459 = pneg %p458
      $region54: #{forward.1} parent=5 // pred_check_branch
        %461 = sbr.rel (%p459) target = $region56
      $region55: #{forward.1} parent=5 // pred_region
        // Predicated region
        $region57: #{forward.1} parent=55 // pred_check
          %p462 = pneg %p49
        $region58: #{forward.1} parent=55 // pred_check_branch
          %464 = sbr.rel (%p462) target = $region60
        $region59: #{forward.1} parent=55 // pred_region
          %s465 = sand.u32 %s39, 1
          %s466 = scalar_lea.sflag [#allocation3], %s465
          %s467 = sand.u32 %s39, 1
          %s468 = smul.addr %s467, 8
          %s469 = scalar_lea.vmem [#allocation2], %s468
          %s471 = ssub.s32 128, 128
          %472 = vsyncadd %s466, %s471
          %s473 = smul.addr %s29, 2
          %s474 = smul.addr %s473, 64
          %s475 = scalar_lea.hbm %s0, %s474
          %s476 = sshll.u32 %s469, 4
          %s477 = int_to_ptr.vmem [resolvable:$true] %s476
          %482 = dma.hbm_to_vmem [thread:$0]  %s475, 128, %s477, %s466, 64, 64, 4
        $region60: #{forward.1} parent=55 // pred_fallthru
          _
        // Predicated region
        $region61: #{forward.1} parent=55 // pred_check
          %p483 = pneg %p75
        $region62: #{forward.1} parent=55 // pred_check_branch
          %485 = sbr.rel (%p483) target = $region64
        $region63: #{forward.1} parent=55 // pred_region
          %p486 = scmp.lt.s32.totalorder %s29, 7
          %s487 = scalar_select %p486, %s29, 7
          %s488 = smul.addr %s487, 2
          %s489 = smul.addr %s488, 8
          %s490 = scalar_lea.vmem %s1, %s489
        $region64: #{forward.1} parent=55 // pred_fallthru
          _
        // Predicated region
        $region65: #{forward.1} parent=55 // pred_check
          %p491 = pneg %p101
        $region66: #{forward.1} parent=55 // pred_check_branch
          %493 = sbr.rel (%p491) target = $region68
        $region67: #{forward.1} parent=55 // pred_region
          %p494 = scmp.lt.s32.totalorder %s29, 7
          %s495 = scalar_select %p494, %s29, 7
          %s496 = smul.addr %s495, 2
          %s497 = smul.addr %s496, 8
          %s498 = scalar_lea.vmem %s2, %s497
        $region68: #{forward.1} parent=55 // pred_fallthru
          _
      $region56: #{forward.1} parent=5 // pred_fallthru
        _
      %p499 = scmp.le.s32.totalorder 1, %s29
      %p500 = scmp.lt.s32.totalorder %s29, 9
      %p501 = pnand %p499, %p500
      %p502 = pneg %p501
      // Predicated region
      $region69: #{forward.1} parent=5 // pred_check
        _
      $region70: #{forward.1} parent=5 // pred_check_branch
        %504 = sbr.rel (%p501) target = $region72
      $region71: #{forward.1} parent=5 // pred_region
        %s505 = ssub.s32 %s29, 1
        %s506 = sand.u32 %s42, 1
        %s507 = scalar_lea.sflag [#allocation3], %s506
        %s508 = sand.u32 %s42, 1
        %s509 = smul.addr %s508, 8
        %s510 = scalar_lea.vmem [#allocation2], %s509
        // Predicated region
        $region73: #{forward.1} parent=71 // pred_check
          %p511 = pneg %p55
        $region74: #{forward.1} parent=71 // pred_check_branch
          %513 = sbr.rel (%p511) target = $region76
        $region75: #{forward.1} parent=71 // pred_region
          %514 = dma.done %s507, 128
        $region76: #{forward.1} parent=71 // pred_fallthru
          _
        // Predicated region
        $region77: #{forward.1} parent=71 // pred_check
          %p515 = pneg %p128
        $region78: #{forward.1} parent=71 // pred_check_branch
          %517 = sbr.rel (%p515) target = $region80
        $region79: #{forward.1} parent=71 // pred_region
          %518 = dma.done [#allocation6], 2048
        $region80: #{forward.1} parent=71 // pred_fallthru
          _
        // Predicated region
        $region81: #{forward.1} parent=71 // pred_check
          %p519 = pneg %p149
        $region82: #{forward.1} parent=71 // pred_check_branch
          %521 = sbr.rel (%p519) target = $region84
        $region83: #{forward.1} parent=71 // pred_region
          %522 = dma.done [#allocation6], 2048
        $region84: #{forward.1} parent=71 // pred_fallthru
          _
        // Predicated region
        $region85: #{forward.1} parent=71 // pred_check
          %p523 = pneg %p170
        $region86: #{forward.1} parent=71 // pred_check_branch
          %525 = sbr.rel (%p523) target = $region88
        $region87: #{forward.1} parent=71 // pred_region
          %526 = dma.done [#allocation9], 2048
        $region88: #{forward.1} parent=71 // pred_fallthru
          _
        // Predicated region
        $region89: #{forward.1} parent=71 // pred_check
          %p527 = pneg %p212
        $region90: #{forward.1} parent=71 // pred_check_branch
          %529 = sbr.rel (%p527) target = $region92
        $region91: #{forward.1} parent=71 // pred_region
          %530 = dma.done [#allocation9], 2048
        $region92: #{forward.1} parent=71 // pred_fallthru
          _
        // Predicated region
        $region93: #{forward.1} parent=71 // pred_check
          %p531 = pneg %p233
        $region94: #{forward.1} parent=71 // pred_check_branch
          %533 = sbr.rel (%p531) target = $region96
        $region95: #{forward.1} parent=71 // pred_region
          %534 = dma.done [#allocation12], 2048
        $region96: #{forward.1} parent=71 // pred_fallthru
          _
        // Predicated region
        $region97: #{forward.1} parent=71 // pred_check
          %p535 = pneg %p254
        $region98: #{forward.1} parent=71 // pred_check_branch
          %537 = sbr.rel (%p535) target = $region100
        $region99: #{forward.1} parent=71 // pred_region
          %538 = dma.done [#allocation12], 2048
        $region100: #{forward.1} parent=71 // pred_fallthru
          _
        // Predicated region
        $region101: #{forward.1} parent=71 // pred_check
          %p539 = pneg %p296
        $region102: #{forward.1} parent=71 // pred_check_branch
          %541 = sbr.rel (%p539) target = $region104
        $region103: #{forward.1} parent=71 // pred_region
          %542 = dma.done [#allocation15], 2048
        $region104: #{forward.1} parent=71 // pred_fallthru
          _
        %s543 = sand.u32 %s42, 1
        %s544 = scalar_lea.sflag [#allocation3], %s543
        %s545 = sand.u32 %s42, 1
        %s546 = smul.addr %s545, 8
        %s547 = scalar_lea.vmem [#allocation2], %s546
        %p548 = pneg %p55
        %p549 = pneg %p52
        %p550 = scmp.lt.s32.totalorder %s34, 7
        %s551 = scalar_select %p550, %s34, 7
        %s552 = smul.addr %s551, 2
        %s553 = smul.addr %s552, 8
        %s554 = scalar_lea.vmem %s1, %s553
        %p555 = pneg %p81
        %p556 = pneg %p78
        %p557 = scmp.lt.s32.totalorder %s34, 7
        %s558 = scalar_select %p557, %s34, 7
        %s559 = smul.addr %s558, 2
        %s560 = smul.addr %s559, 8
        %s561 = scalar_lea.vmem %s2, %s560
        %p562 = pneg %p107
        %p563 = pneg %p104
        %p564 = pneg %p128
        %p565 = pneg %p125
        %p566 = pneg %p149
        %p567 = pneg %p146
        %p568 = pneg %p170
        %p569 = pneg %p167
        %p570 = pneg %p191
        %p571 = pneg %p188
        %p572 = pneg %p212
        %p573 = pneg %p209
        %p574 = pneg %p233
        %p575 = pneg %p230
        %p576 = pneg %p254
        %p577 = pneg %p251
        %p578 = pneg %p275
        %p579 = pneg %p272
        %p580 = pneg %p296
        %p581 = pneg %p293
        %p582 = pneg %p317
        %p583 = pneg %p314
        %p584 = pneg %p343
        %p585 = pneg %p340
        %s586 = sand.u32 %s330, 1
        %s587 = scalar_lea.sflag [#allocation4], %s586
        %s588 = sand.u32 %s330, 1
        %s589 = smul.addr %s588, 16
        %s590 = scalar_lea.vmem [#allocation16], %s589
        %p591 = scmp.lt.s32.totalorder %s34, 7
        %s592 = scalar_select %p591, %s34, 7
        %s593 = smul.addr %s592, 2
        %s594 = smul.addr %s593, 8
        %s595 = scalar_lea.vmem %s1, %s594
        %p596 = scmp.lt.s32.totalorder %s34, 7
        %s597 = scalar_select %p596, %s34, 7
        %s598 = smul.addr %s597, 2
        %s599 = smul.addr %s598, 8
        %s600 = scalar_lea.vmem %s2, %s599
        %v602 = vld [vmem:[%s510] sm:$0xf]
        %v603 = vld [vmem:[%s510 + $0x4] sm:$0xf]
        %v604 = vld [vmem:[%s600] sm:$0xff]
        %v605 = vld [vmem:[%s600 + $0x8] sm:$0xff]
        %v606 = vld [vmem:[%s595] sm:$0xff]
        %v607 = vld [vmem:[%s595 + $0x8] sm:$0xff]
        %609 = vset.pattern.permute.xlu0 0
        %610 = vperm.xlu0 %609, %v604
        %v611 = vpop.permute.xlu0 %610
        %614 = vset.pattern.permute.xlu0 0
        %615 = vperm.xlu0 %614, %v605
        %v616 = vpop.permute.xlu0 %615
        %v618 = vmul.f32 %v606, %v611
        %v619 = vmul.f32 %v607, %v616
        %v620 = vpack.c.bf16 %v619, %v618
        %v623 = vunpack.c.l.b16 %v602
        %v624 = vunpack.c.l.b16 %v603
        %v625 = vpack.c.b16 %v624, %v623
        %vm626 = vcmask 130048
        %v628 = vsel %vm626, %v625, 0
        %630 = vmatprep.subr.bf16.mxu0 0
        %631 = vmatpush1.bf16.msra.mxu0 %v620
        %632 = vmatprep.subr.bf16.mxu0 0
        %633 = vmatpush1.bf16.msra.mxu0 0
        %634 = vmatprep.subr.bf16.mxu0 0
        %635 = vmatpush1.bf16.msra.mxu0 0
        %636 = vmatprep.subr.bf16.mxu0 0
        %637 = vmatpush1.bf16.msra.mxu0 0
        %638 = vmatprep.subr.bf16.mxu0 0
        %639 = vmatpush1.bf16.msra.mxu0 0
        %640 = vmatprep.subr.bf16.mxu0 0
        %641 = vmatpush1.bf16.msra.mxu0 0
        %642 = vmatprep.subr.bf16.mxu0 0
        %643 = vmatpush1.bf16.msra.mxu0 0
        %644 = vmatprep.subr.bf16.mxu0 0
        %645 = vmatpush1.bf16.msra.mxu0 0
        %646 = vmatprep.subr.bf16.mxu0 0
        %647 = vmatpush1.bf16.msra.mxu0 0
        %648 = vmatprep.subr.bf16.mxu0 0
        %649 = vmatpush1.bf16.msra.mxu0 0
        %650 = vmatprep.subr.bf16.mxu0 0
        %651 = vmatpush1.bf16.msra.mxu0 0
        %652 = vmatprep.subr.bf16.mxu0 0
        %653 = vmatpush1.bf16.msra.mxu0 0
        %654 = vmatprep.subr.bf16.mxu0 0
        %655 = vmatpush1.bf16.msra.mxu0 0
        %656 = vmatprep.subr.bf16.mxu0 0
        %657 = vmatpush1.bf16.msra.mxu0 0
        %658 = vmatprep.subr.bf16.mxu0 0
        %659 = vmatpush1.bf16.msra.mxu0 0
        %660 = vmatprep.subr.bf16.mxu0 0
        %661 = vmatpush1.bf16.msra.mxu0 0
        %662 = vmatprep.mubr.bf16.mxu0 0
        %663 = vmatmul.mubr.bf16.gmra.mrb[0].mxu0 %v628
        %v664 = vpop.f32.mrb[0].mxu0
        %v665 = vadd.f32 0.0, %v664
        %v666 = vpop.f32.mrb[0].mxu0
        %v667 = vpop.f32.mrb[0].mxu0
        %v668 = vadd.f32 0.0, %v667
        %v669 = vpop.f32.mrb[0].mxu0
        %670 = vdwg.mxu0
        %v671 = vadd.f32 %v618, %v619
        %v672 = vrot.slane %v671, 4
        %v673 = vadd.f32 %v671, %v672
        %v674 = vrot.slane %v673, 2
        %v675 = vadd.f32 %v673, %v674
        %v676 = vrot.slane %v675, 1
        %v677 = vadd.f32 %v675, %v676
        %v678 = vld [vmem:[%s6] sm:$0x1]
        %v679 = vld [vmem:[#allocation8] sm:$0xff]
        %v680 = vld [vmem:[#allocation8 + $0x8] sm:$0xff]
        %v681 = vld [vmem:[#allocation8 + $0x10] sm:$0xff]
        %v682 = vld [vmem:[#allocation8 + $0x18] sm:$0xff]
        %v683 = vld [vmem:[#allocation8 + $0x20] sm:$0xff]
        %v684 = vld [vmem:[#allocation8 + $0x28] sm:$0xff]
        %v685 = vld [vmem:[#allocation8 + $0x30] sm:$0xff]
        %v686 = vld [vmem:[#allocation8 + $0x38] sm:$0xff]
        %v687 = vld [vmem:[#allocation8 + $0x40] sm:$0xff]
        %v688 = vld [vmem:[#allocation8 + $0x48] sm:$0xff]
        %v689 = vld [vmem:[#allocation8 + $0x50] sm:$0xff]
        %v690 = vld [vmem:[#allocation8 + $0x58] sm:$0xff]
        %v691 = vld [vmem:[#allocation8 + $0x60] sm:$0xff]
        %v692 = vld [vmem:[#allocation8 + $0x68] sm:$0xff]
        %v693 = vld [vmem:[#allocation8 + $0x70] sm:$0xff]
        %v694 = vld [vmem:[#allocation8 + $0x78] sm:$0xff]
        %695 = vmatprep.subr.mxu0 0.0
        %696 = vmatpush1.msra.mxu0 %v679
        %697 = vmatprep.subr.mxu0 0.0
        %698 = vmatpush1.msra.mxu0 %v680
        %699 = vmatprep.subr.mxu0 0.0
        %700 = vmatpush1.msra.mxu0 %v681
        %701 = vmatprep.subr.mxu0 0.0
        %702 = vmatpush1.msra.mxu0 %v682
        %703 = vmatprep.subr.mxu0 0.0
        %704 = vmatpush1.msra.mxu0 %v683
        %705 = vmatprep.subr.mxu0 0.0
        %706 = vmatpush1.msra.mxu0 %v684
        %707 = vmatprep.subr.mxu0 0.0
        %708 = vmatpush1.msra.mxu0 %v685
        %709 = vmatprep.subr.mxu0 0.0
        %710 = vmatpush1.msra.mxu0 %v686
        %711 = vmatprep.subr.mxu0 0.0
        %712 = vmatpush1.msra.mxu0 %v687
        %713 = vmatprep.subr.mxu0 0.0
        %714 = vmatpush1.msra.mxu0 %v688
        %715 = vmatprep.subr.mxu0 0.0
        %716 = vmatpush1.msra.mxu0 %v689
        %717 = vmatprep.subr.mxu0 0.0
        %718 = vmatpush1.msra.mxu0 %v690
        %719 = vmatprep.subr.mxu0 0.0
        %720 = vmatpush1.msra.mxu0 %v691
        %721 = vmatprep.subr.mxu0 0.0
        %722 = vmatpush1.msra.mxu0 %v692
        %723 = vmatprep.subr.mxu0 0.0
        %724 = vmatpush1.msra.mxu0 %v693
        %725 = vmatprep.subr.mxu0 0.0
        %726 = vmatpush1.msra.mxu0 %v694
        %727 = vmatprep.subr.mxu0 0.0
        %728 = vmatpush1.msra.mxu0 0.0
        %729 = vmatprep.subr.mxu0 0.0
        %730 = vmatpush1.msra.mxu0 0.0
        %731 = vmatprep.subr.mxu0 0.0
        %732 = vmatpush1.msra.mxu0 0.0
        %733 = vmatprep.subr.mxu0 0.0
        %734 = vmatpush1.msra.mxu0 0.0
        %735 = vmatprep.subr.mxu0 0.0
        %736 = vmatpush1.msra.mxu0 0.0
        %737 = vmatprep.subr.mxu0 0.0
        %738 = vmatpush1.msra.mxu0 0.0
        %739 = vmatprep.subr.mxu0 0.0
        %740 = vmatpush1.msra.mxu0 0.0
        %741 = vmatprep.subr.mxu0 0.0
        %742 = vmatpush1.msra.mxu0 0.0
        %743 = vmatprep.subr.mxu0 0.0
        %744 = vmatpush1.msra.mxu0 0.0
        %745 = vmatprep.subr.mxu0 0.0
        %746 = vmatpush1.msra.mxu0 0.0
        %747 = vmatprep.subr.mxu0 0.0
        %748 = vmatpush1.msra.mxu0 0.0
        %749 = vmatprep.subr.mxu0 0.0
        %750 = vmatpush1.msra.mxu0 0.0
        %751 = vmatprep.subr.mxu0 0.0
        %752 = vmatpush1.msra.mxu0 0.0
        %753 = vmatprep.subr.mxu0 0.0
        %754 = vmatpush1.msra.mxu0 0.0
        %755 = vmatprep.subr.mxu0 0.0
        %756 = vmatpush1.msra.mxu0 0.0
        %757 = vmatprep.subr.mxu0 0.0
        %758 = vmatpush1.msra.mxu0 0.0
        %759 = vmatprep.mubr.f32.mxu0 0.0
        %760 = vmatmul.mubr.f32.gmra.mrb[0].mxu0 %v677
        %v761 = vpop.f32.mrb[0].mxu0
        %v762 = vadd.f32 0.0, %v761
        %v763 = vpop.f32.mrb[0].mxu0
        %764 = vdwg.mxu0
        %v765 = vadd.f32 %v678, %v762
        %v766 = vld [vmem:[#allocation5] sm:$0xff]
        %v767 = vld [vmem:[#allocation5 + $0x8] sm:$0xff]
        %v768 = vld [vmem:[#allocation5 + $0x10] sm:$0xff]
        %v769 = vld [vmem:[#allocation5 + $0x18] sm:$0xff]
        %v770 = vld [vmem:[#allocation5 + $0x20] sm:$0xff]
        %v771 = vld [vmem:[#allocation5 + $0x28] sm:$0xff]
        %v772 = vld [vmem:[#allocation5 + $0x30] sm:$0xff]
        %v773 = vld [vmem:[#allocation5 + $0x38] sm:$0xff]
        %v774 = vld [vmem:[#allocation5 + $0x40] sm:$0xff]
        %v775 = vld [vmem:[#allocation5 + $0x48] sm:$0xff]
        %v776 = vld [vmem:[#allocation5 + $0x50] sm:$0xff]
        %v777 = vld [vmem:[#allocation5 + $0x58] sm:$0xff]
        %v778 = vld [vmem:[#allocation5 + $0x60] sm:$0xff]
        %v779 = vld [vmem:[#allocation5 + $0x68] sm:$0xff]
        %v780 = vld [vmem:[#allocation5 + $0x70] sm:$0xff]
        %v781 = vld [vmem:[#allocation5 + $0x78] sm:$0xff]
        %v782 = vld [vmem:[#allocation7] sm:$0xff]
        %v783 = vld [vmem:[#allocation7 + $0x8] sm:$0xff]
        %v784 = vld [vmem:[#allocation7 + $0x10] sm:$0xff]
        %v785 = vld [vmem:[#allocation7 + $0x18] sm:$0xff]
        %v786 = vld [vmem:[#allocation7 + $0x20] sm:$0xff]
        %v787 = vld [vmem:[#allocation7 + $0x28] sm:$0xff]
        %v788 = vld [vmem:[#allocation7 + $0x30] sm:$0xff]
        %v789 = vld [vmem:[#allocation7 + $0x38] sm:$0xff]
        %v790 = vld [vmem:[#allocation7 + $0x40] sm:$0xff]
        %v791 = vld [vmem:[#allocation7 + $0x48] sm:$0xff]
        %v792 = vld [vmem:[#allocation7 + $0x50] sm:$0xff]
        %v793 = vld [vmem:[#allocation7 + $0x58] sm:$0xff]
        %v794 = vld [vmem:[#allocation7 + $0x60] sm:$0xff]
        %v795 = vld [vmem:[#allocation7 + $0x68] sm:$0xff]
        %v796 = vld [vmem:[#allocation7 + $0x70] sm:$0xff]
        %v797 = vld [vmem:[#allocation7 + $0x78] sm:$0xff]
        %798 = vmatprep.subr.mxu0 0.0
        %799 = vmatpush1.msra.mxu0 %v782
        %800 = vmatprep.subr.mxu0 0.0
        %801 = vmatpush1.msra.mxu0 %v783
        %802 = vmatprep.subr.mxu0 0.0
        %803 = vmatpush1.msra.mxu0 %v784
        %804 = vmatprep.subr.mxu0 0.0
        %805 = vmatpush1.msra.mxu0 %v785
        %806 = vmatprep.subr.mxu0 0.0
        %807 = vmatpush1.msra.mxu0 %v786
        %808 = vmatprep.subr.mxu0 0.0
        %809 = vmatpush1.msra.mxu0 %v787
        %810 = vmatprep.subr.mxu0 0.0
        %811 = vmatpush1.msra.mxu0 %v788
        %812 = vmatprep.subr.mxu0 0.0
        %813 = vmatpush1.msra.mxu0 %v789
        %814 = vmatprep.subr.mxu0 0.0
        %815 = vmatpush1.msra.mxu0 %v790
        %816 = vmatprep.subr.mxu0 0.0
        %817 = vmatpush1.msra.mxu0 %v791
        %818 = vmatprep.subr.mxu0 0.0
        %819 = vmatpush1.msra.mxu0 %v792
        %820 = vmatprep.subr.mxu0 0.0
        %821 = vmatpush1.msra.mxu0 %v793
        %822 = vmatprep.subr.mxu0 0.0
        %823 = vmatpush1.msra.mxu0 %v794
        %824 = vmatprep.subr.mxu0 0.0
        %825 = vmatpush1.msra.mxu0 %v795
        %826 = vmatprep.subr.mxu0 0.0
        %827 = vmatpush1.msra.mxu0 %v796
        %828 = vmatprep.subr.mxu0 0.0
        %829 = vmatpush1.msra.mxu0 %v797
        %830 = vmatprep.subr.mxu0 0.0
        %831 = vmatpush1.msra.mxu0 0.0
        %832 = vmatprep.subr.mxu0 0.0
        %833 = vmatpush1.msra.mxu0 0.0
        %834 = vmatprep.subr.mxu0 0.0
        %835 = vmatpush1.msra.mxu0 0.0
        %836 = vmatprep.subr.mxu0 0.0
        %837 = vmatpush1.msra.mxu0 0.0
        %838 = vmatprep.subr.mxu0 0.0
        %839 = vmatpush1.msra.mxu0 0.0
        %840 = vmatprep.subr.mxu0 0.0
        %841 = vmatpush1.msra.mxu0 0.0
        %842 = vmatprep.subr.mxu0 0.0
        %843 = vmatpush1.msra.mxu0 0.0
        %844 = vmatprep.subr.mxu0 0.0
        %845 = vmatpush1.msra.mxu0 0.0
        %846 = vmatprep.subr.mxu0 0.0
        %847 = vmatpush1.msra.mxu0 0.0
        %848 = vmatprep.subr.mxu0 0.0
        %849 = vmatpush1.msra.mxu0 0.0
        %850 = vmatprep.subr.mxu0 0.0
        %851 = vmatpush1.msra.mxu0 0.0
        %852 = vmatprep.subr.mxu0 0.0
        %853 = vmatpush1.msra.mxu0 0.0
        %854 = vmatprep.subr.mxu0 0.0
        %855 = vmatpush1.msra.mxu0 0.0
        %856 = vmatprep.subr.mxu0 0.0
        %857 = vmatpush1.msra.mxu0 0.0
        %858 = vmatprep.subr.mxu0 0.0
        %859 = vmatpush1.msra.mxu0 0.0
        %860 = vmatprep.subr.mxu0 0.0
        %861 = vmatpush1.msra.mxu0 0.0
        %862 = vmatprep.mubr.f32.mxu0 0.0
        %863 = vmatmul.mubr.f32.gmra.mrb[0].mxu0 %v665
        %v864 = vpop.f32.mrb[0].mxu0
        %v865 = vadd.f32 0.0, %v864
        %v866 = vpop.f32.mrb[0].mxu0
        %867 = vmatprep.mubr.f32.mxu0 0.0
        %868 = vmatmul.mubr.f32.gmra.mrb[0].mxu0 %v668
        %v869 = vpop.f32.mrb[0].mxu0
        %v870 = vadd.f32 0.0, %v869
        %v871 = vpop.f32.mrb[0].mxu0
        %872 = vdwg.mxu0
        %873 = vmatprep.subr.mxu0 0.0
        %874 = vmatpush1.msra.mxu0 %v766
        %875 = vmatprep.subr.mxu0 0.0
        %876 = vmatpush1.msra.mxu0 %v767
        %877 = vmatprep.subr.mxu0 0.0
        %878 = vmatpush1.msra.mxu0 %v768
        %879 = vmatprep.subr.mxu0 0.0
        %880 = vmatpush1.msra.mxu0 %v769
        %881 = vmatprep.subr.mxu0 0.0
        %882 = vmatpush1.msra.mxu0 %v770
        %883 = vmatprep.subr.mxu0 0.0
        %884 = vmatpush1.msra.mxu0 %v771
        %885 = vmatprep.subr.mxu0 0.0
        %886 = vmatpush1.msra.mxu0 %v772
        %887 = vmatprep.subr.mxu0 0.0
        %888 = vmatpush1.msra.mxu0 %v773
        %889 = vmatprep.subr.mxu0 0.0
        %890 = vmatpush1.msra.mxu0 %v774
        %891 = vmatprep.subr.mxu0 0.0
        %892 = vmatpush1.msra.mxu0 %v775
        %893 = vmatprep.subr.mxu0 0.0
        %894 = vmatpush1.msra.mxu0 %v776
        %895 = vmatprep.subr.mxu0 0.0
        %896 = vmatpush1.msra.mxu0 %v777
        %897 = vmatprep.subr.mxu0 0.0
        %898 = vmatpush1.msra.mxu0 %v778
        %899 = vmatprep.subr.mxu0 0.0
        %900 = vmatpush1.msra.mxu0 %v779
        %901 = vmatprep.subr.mxu0 0.0
        %902 = vmatpush1.msra.mxu0 %v780
        %903 = vmatprep.subr.mxu0 0.0
        %904 = vmatpush1.msra.mxu0 %v781
        %905 = vmatprep.subr.mxu0 0.0
        %906 = vmatpush1.msra.mxu0 0.0
        %907 = vmatprep.subr.mxu0 0.0
        %908 = vmatpush1.msra.mxu0 0.0
        %909 = vmatprep.subr.mxu0 0.0
        %910 = vmatpush1.msra.mxu0 0.0
        %911 = vmatprep.subr.mxu0 0.0
        %912 = vmatpush1.msra.mxu0 0.0
        %913 = vmatprep.subr.mxu0 0.0
        %914 = vmatpush1.msra.mxu0 0.0
        %915 = vmatprep.subr.mxu0 0.0
        %916 = vmatpush1.msra.mxu0 0.0
        %917 = vmatprep.subr.mxu0 0.0
        %918 = vmatpush1.msra.mxu0 0.0
        %919 = vmatprep.subr.mxu0 0.0
        %920 = vmatpush1.msra.mxu0 0.0
        %921 = vmatprep.subr.mxu0 0.0
        %922 = vmatpush1.msra.mxu0 0.0
        %923 = vmatprep.subr.mxu0 0.0
        %924 = vmatpush1.msra.mxu0 0.0
        %925 = vmatprep.subr.mxu0 0.0
        %926 = vmatpush1.msra.mxu0 0.0
        %927 = vmatprep.subr.mxu0 0.0
        %928 = vmatpush1.msra.mxu0 0.0
        %929 = vmatprep.subr.mxu0 0.0
        %930 = vmatpush1.msra.mxu0 0.0
        %931 = vmatprep.subr.mxu0 0.0
        %932 = vmatpush1.msra.mxu0 0.0
        %933 = vmatprep.subr.mxu0 0.0
        %934 = vmatpush1.msra.mxu0 0.0
        %935 = vmatprep.subr.mxu0 0.0
        %936 = vmatpush1.msra.mxu0 0.0
        %937 = vmatprep.mubr.f32.mxu0 0.0
        %938 = vmatmul.mubr.f32.gmra.mrb[0].mxu0 %v618
        %v939 = vpop.f32.mrb[0].mxu0
        %v940 = vadd.f32 %v865, %v939
        %v941 = vpop.f32.mrb[0].mxu0
        %942 = vmatprep.mubr.f32.mxu0 0.0
        %943 = vmatmul.mubr.f32.gmra.mrb[0].mxu0 %v619
        %v944 = vpop.f32.mrb[0].mxu0
        %v945 = vadd.f32 %v870, %v944
        %v946 = vpop.f32.mrb[0].mxu0
        %947 = vdwg.mxu0
        %v949 = vlaneseq
        %v950 = vshrl.u32 %v949, 7
        %v951 = vsub.s32 0, %v950
        %v952 = vrot.slane %v765, %v951
        %v954 = vadd.f32 %v940, %v952
        %v955 = vadd.f32 %v945, %v952
        %v956 = vxor.u32 %v954, 2147483648
        %v957 = vxor.u32 %v955, 2147483648
        %v958 = vmul.f32 %v956, 1.442695
        %v959 = vpow.pop %v958
        %v960 = vmul.f32 %v957, 1.442695
        %v961 = vpow.pop %v960
        %v962 = vadd.f32 %v959, 1.0
        %v963 = vadd.f32 %v961, 1.0
        %v964 = vrcp.pop %v962
        %v965 = vmul.f32 1.0, %v964
        %v966 = vrcp.pop %v963
        %v967 = vmul.f32 1.0, %v966
        %v968 = vmul.f32 %v965, %v611
        %v969 = vmul.f32 %v967, %v616
        %v970 = vpack.c.bf16 %v969, %v968
        %971 = vmatprep.subr.bf16.mxu0 0
        %972 = vmatpush1.bf16.msra.mxu0 %v970
        %973 = vmatprep.subr.bf16.mxu0 0
        %974 = vmatpush1.bf16.msra.mxu0 0
        %975 = vmatprep.subr.bf16.mxu0 0
        %976 = vmatpush1.bf16.msra.mxu0 0
        %977 = vmatprep.subr.bf16.mxu0 0
        %978 = vmatpush1.bf16.msra.mxu0 0
        %979 = vmatprep.subr.bf16.mxu0 0
        %980 = vmatpush1.bf16.msra.mxu0 0
        %981 = vmatprep.subr.bf16.mxu0 0
        %982 = vmatpush1.bf16.msra.mxu0 0
        %983 = vmatprep.subr.bf16.mxu0 0
        %984 = vmatpush1.bf16.msra.mxu0 0
        %985 = vmatprep.subr.bf16.mxu0 0
        %986 = vmatpush1.bf16.msra.mxu0 0
        %987 = vmatprep.subr.bf16.mxu0 0
        %988 = vmatpush1.bf16.msra.mxu0 0
        %989 = vmatprep.subr.bf16.mxu0 0
        %990 = vmatpush1.bf16.msra.mxu0 0
        %991 = vmatprep.subr.bf16.mxu0 0
        %992 = vmatpush1.bf16.msra.mxu0 0
        %993 = vmatprep.subr.bf16.mxu0 0
        %994 = vmatpush1.bf16.msra.mxu0 0
        %995 = vmatprep.subr.bf16.mxu0 0
        %996 = vmatpush1.bf16.msra.mxu0 0
        %997 = vmatprep.subr.bf16.mxu0 0
        %998 = vmatpush1.bf16.msra.mxu0 0
        %999 = vmatprep.subr.bf16.mxu0 0
        %1000 = vmatpush1.bf16.msra.mxu0 0
        %1001 = vmatprep.subr.bf16.mxu0 0
        %1002 = vmatpush1.bf16.msra.mxu0 0
        %1003 = vmatprep.mubr.bf16.mxu0 0
        %1004 = vmatmul.mubr.bf16.gmra.mrb[0].mxu0 %v628
        %v1005 = vpop.f32.mrb[0].mxu0
        %v1006 = vadd.f32 0.0, %v1005
        %v1007 = vpop.f32.mrb[0].mxu0
        %v1008 = vpop.f32.mrb[0].mxu0
        %v1009 = vadd.f32 0.0, %v1008
        %v1010 = vpop.f32.mrb[0].mxu0
        %1011 = vdwg.mxu0
        %v1012 = vadd.f32 %v968, %v969
        %v1013 = vrot.slane %v1012, 4
        %v1014 = vadd.f32 %v1012, %v1013
        %v1015 = vrot.slane %v1014, 2
        %v1016 = vadd.f32 %v1014, %v1015
        %v1017 = vrot.slane %v1016, 1
        %v1018 = vadd.f32 %v1016, %v1017
        %v1019 = vld [vmem:[%s10] sm:$0x1]
        %v1020 = vld [vmem:[#allocation13] sm:$0xff]
        %v1021 = vld [vmem:[#allocation13 + $0x8] sm:$0xff]
        %v1022 = vld [vmem:[#allocation13 + $0x10] sm:$0xff]
        %v1023 = vld [vmem:[#allocation13 + $0x18] sm:$0xff]
        %v1024 = vld [vmem:[#allocation13 + $0x20] sm:$0xff]
        %v1025 = vld [vmem:[#allocation13 + $0x28] sm:$0xff]
        %v1026 = vld [vmem:[#allocation13 + $0x30] sm:$0xff]
        %v1027 = vld [vmem:[#allocation13 + $0x38] sm:$0xff]
        %v1028 = vld [vmem:[#allocation13 + $0x40] sm:$0xff]
        %v1029 = vld [vmem:[#allocation13 + $0x48] sm:$0xff]
        %v1030 = vld [vmem:[#allocation13 + $0x50] sm:$0xff]
        %v1031 = vld [vmem:[#allocation13 + $0x58] sm:$0xff]
        %v1032 = vld [vmem:[#allocation13 + $0x60] sm:$0xff]
        %v1033 = vld [vmem:[#allocation13 + $0x68] sm:$0xff]
        %v1034 = vld [vmem:[#allocation13 + $0x70] sm:$0xff]
        %v1035 = vld [vmem:[#allocation13 + $0x78] sm:$0xff]
        %1036 = vmatprep.subr.mxu0 0.0
        %1037 = vmatpush1.msra.mxu0 %v1020
        %1038 = vmatprep.subr.mxu0 0.0
        %1039 = vmatpush1.msra.mxu0 %v1021
        %1040 = vmatprep.subr.mxu0 0.0
        %1041 = vmatpush1.msra.mxu0 %v1022
        %1042 = vmatprep.subr.mxu0 0.0
        %1043 = vmatpush1.msra.mxu0 %v1023
        %1044 = vmatprep.subr.mxu0 0.0
        %1045 = vmatpush1.msra.mxu0 %v1024
        %1046 = vmatprep.subr.mxu0 0.0
        %1047 = vmatpush1.msra.mxu0 %v1025
        %1048 = vmatprep.subr.mxu0 0.0
        %1049 = vmatpush1.msra.mxu0 %v1026
        %1050 = vmatprep.subr.mxu0 0.0
        %1051 = vmatpush1.msra.mxu0 %v1027
        %1052 = vmatprep.subr.mxu0 0.0
        %1053 = vmatpush1.msra.mxu0 %v1028
        %1054 = vmatprep.subr.mxu0 0.0
        %1055 = vmatpush1.msra.mxu0 %v1029
        %1056 = vmatprep.subr.mxu0 0.0
        %1057 = vmatpush1.msra.mxu0 %v1030
        %1058 = vmatprep.subr.mxu0 0.0
        %1059 = vmatpush1.msra.mxu0 %v1031
        %1060 = vmatprep.subr.mxu0 0.0
        %1061 = vmatpush1.msra.mxu0 %v1032
        %1062 = vmatprep.subr.mxu0 0.0
        %1063 = vmatpush1.msra.mxu0 %v1033
        %1064 = vmatprep.subr.mxu0 0.0
        %1065 = vmatpush1.msra.mxu0 %v1034
        %1066 = vmatprep.subr.mxu0 0.0
        %1067 = vmatpush1.msra.mxu0 %v1035
        %1068 = vmatprep.subr.mxu0 0.0
        %1069 = vmatpush1.msra.mxu0 0.0
        %1070 = vmatprep.subr.mxu0 0.0
        %1071 = vmatpush1.msra.mxu0 0.0
        %1072 = vmatprep.subr.mxu0 0.0
        %1073 = vmatpush1.msra.mxu0 0.0
        %1074 = vmatprep.subr.mxu0 0.0
        %1075 = vmatpush1.msra.mxu0 0.0
        %1076 = vmatprep.subr.mxu0 0.0
        %1077 = vmatpush1.msra.mxu0 0.0
        %1078 = vmatprep.subr.mxu0 0.0
        %1079 = vmatpush1.msra.mxu0 0.0
        %1080 = vmatprep.subr.mxu0 0.0
        %1081 = vmatpush1.msra.mxu0 0.0
        %1082 = vmatprep.subr.mxu0 0.0
        %1083 = vmatpush1.msra.mxu0 0.0
        %1084 = vmatprep.subr.mxu0 0.0
        %1085 = vmatpush1.msra.mxu0 0.0
        %1086 = vmatprep.subr.mxu0 0.0
        %1087 = vmatpush1.msra.mxu0 0.0
        %1088 = vmatprep.subr.mxu0 0.0
        %1089 = vmatpush1.msra.mxu0 0.0
        %1090 = vmatprep.subr.mxu0 0.0
        %1091 = vmatpush1.msra.mxu0 0.0
        %1092 = vmatprep.subr.mxu0 0.0
        %1093 = vmatpush1.msra.mxu0 0.0
        %1094 = vmatprep.subr.mxu0 0.0
        %1095 = vmatpush1.msra.mxu0 0.0
        %1096 = vmatprep.subr.mxu0 0.0
        %1097 = vmatpush1.msra.mxu0 0.0
        %1098 = vmatprep.subr.mxu0 0.0
        %1099 = vmatpush1.msra.mxu0 0.0
        %1100 = vmatprep.mubr.f32.mxu0 0.0
        %1101 = vmatmul.mubr.f32.gmra.mrb[0].mxu0 %v1018
        %v1102 = vpop.f32.mrb[0].mxu0
        %v1103 = vadd.f32 0.0, %v1102
        %v1104 = vpop.f32.mrb[0].mxu0
        %1105 = vdwg.mxu0
        %v1106 = vadd.f32 %v1019, %v1103
        %v1107 = vld [vmem:[#allocation10] sm:$0xff]
        %v1108 = vld [vmem:[#allocation10 + $0x8] sm:$0xff]
        %v1109 = vld [vmem:[#allocation10 + $0x10] sm:$0xff]
        %v1110 = vld [vmem:[#allocation10 + $0x18] sm:$0xff]
        %v1111 = vld [vmem:[#allocation10 + $0x20] sm:$0xff]
        %v1112 = vld [vmem:[#allocation10 + $0x28] sm:$0xff]
        %v1113 = vld [vmem:[#allocation10 + $0x30] sm:$0xff]
        %v1114 = vld [vmem:[#allocation10 + $0x38] sm:$0xff]
        %v1115 = vld [vmem:[#allocation10 + $0x40] sm:$0xff]
        %v1116 = vld [vmem:[#allocation10 + $0x48] sm:$0xff]
        %v1117 = vld [vmem:[#allocation10 + $0x50] sm:$0xff]
        %v1118 = vld [vmem:[#allocation10 + $0x58] sm:$0xff]
        %v1119 = vld [vmem:[#allocation10 + $0x60] sm:$0xff]
        %v1120 = vld [vmem:[#allocation10 + $0x68] sm:$0xff]
        %v1121 = vld [vmem:[#allocation10 + $0x70] sm:$0xff]
        %v1122 = vld [vmem:[#allocation10 + $0x78] sm:$0xff]
        %v1123 = vld [vmem:[#allocation11] sm:$0xff]
        %v1124 = vld [vmem:[#allocation11 + $0x8] sm:$0xff]
        %v1125 = vld [vmem:[#allocation11 + $0x10] sm:$0xff]
        %v1126 = vld [vmem:[#allocation11 + $0x18] sm:$0xff]
        %v1127 = vld [vmem:[#allocation11 + $0x20] sm:$0xff]
        %v1128 = vld [vmem:[#allocation11 + $0x28] sm:$0xff]
        %v1129 = vld [vmem:[#allocation11 + $0x30] sm:$0xff]
        %v1130 = vld [vmem:[#allocation11 + $0x38] sm:$0xff]
        %v1131 = vld [vmem:[#allocation11 + $0x40] sm:$0xff]
        %v1132 = vld [vmem:[#allocation11 + $0x48] sm:$0xff]
        %v1133 = vld [vmem:[#allocation11 + $0x50] sm:$0xff]
        %v1134 = vld [vmem:[#allocation11 + $0x58] sm:$0xff]
        %v1135 = vld [vmem:[#allocation11 + $0x60] sm:$0xff]
        %v1136 = vld [vmem:[#allocation11 + $0x68] sm:$0xff]
        %v1137 = vld [vmem:[#allocation11 + $0x70] sm:$0xff]
        %v1138 = vld [vmem:[#allocation11 + $0x78] sm:$0xff]
        %1139 = vmatprep.subr.mxu0 0.0
        %1140 = vmatpush1.msra.mxu0 %v1123
        %1141 = vmatprep.subr.mxu0 0.0
        %1142 = vmatpush1.msra.mxu0 %v1124
        %1143 = vmatprep.subr.mxu0 0.0
        %1144 = vmatpush1.msra.mxu0 %v1125
        %1145 = vmatprep.subr.mxu0 0.0
        %1146 = vmatpush1.msra.mxu0 %v1126
        %1147 = vmatprep.subr.mxu0 0.0
        %1148 = vmatpush1.msra.mxu0 %v1127
        %1149 = vmatprep.subr.mxu0 0.0
        %1150 = vmatpush1.msra.mxu0 %v1128
        %1151 = vmatprep.subr.mxu0 0.0
        %1152 = vmatpush1.msra.mxu0 %v1129
        %1153 = vmatprep.subr.mxu0 0.0
        %1154 = vmatpush1.msra.mxu0 %v1130
        %1155 = vmatprep.subr.mxu0 0.0
        %1156 = vmatpush1.msra.mxu0 %v1131
        %1157 = vmatprep.subr.mxu0 0.0
        %1158 = vmatpush1.msra.mxu0 %v1132
        %1159 = vmatprep.subr.mxu0 0.0
        %1160 = vmatpush1.msra.mxu0 %v1133
        %1161 = vmatprep.subr.mxu0 0.0
        %1162 = vmatpush1.msra.mxu0 %v1134
        %1163 = vmatprep.subr.mxu0 0.0
        %1164 = vmatpush1.msra.mxu0 %v1135
        %1165 = vmatprep.subr.mxu0 0.0
        %1166 = vmatpush1.msra.mxu0 %v1136
        %1167 = vmatprep.subr.mxu0 0.0
        %1168 = vmatpush1.msra.mxu0 %v1137
        %1169 = vmatprep.subr.mxu0 0.0
        %1170 = vmatpush1.msra.mxu0 %v1138
        %1171 = vmatprep.subr.mxu0 0.0
        %1172 = vmatpush1.msra.mxu0 0.0
        %1173 = vmatprep.subr.mxu0 0.0
        %1174 = vmatpush1.msra.mxu0 0.0
        %1175 = vmatprep.subr.mxu0 0.0
        %1176 = vmatpush1.msra.mxu0 0.0
        %1177 = vmatprep.subr.mxu0 0.0
        %1178 = vmatpush1.msra.mxu0 0.0
        %1179 = vmatprep.subr.mxu0 0.0
        %1180 = vmatpush1.msra.mxu0 0.0
        %1181 = vmatprep.subr.mxu0 0.0
        %1182 = vmatpush1.msra.mxu0 0.0
        %1183 = vmatprep.subr.mxu0 0.0
        %1184 = vmatpush1.msra.mxu0 0.0
        %1185 = vmatprep.subr.mxu0 0.0
        %1186 = vmatpush1.msra.mxu0 0.0
        %1187 = vmatprep.subr.mxu0 0.0
        %1188 = vmatpush1.msra.mxu0 0.0
        %1189 = vmatprep.subr.mxu0 0.0
        %1190 = vmatpush1.msra.mxu0 0.0
        %1191 = vmatprep.subr.mxu0 0.0
        %1192 = vmatpush1.msra.mxu0 0.0
        %1193 = vmatprep.subr.mxu0 0.0
        %1194 = vmatpush1.msra.mxu0 0.0
        %1195 = vmatprep.subr.mxu0 0.0
        %1196 = vmatpush1.msra.mxu0 0.0
        %1197 = vmatprep.subr.mxu0 0.0
        %1198 = vmatpush1.msra.mxu0 0.0
        %1199 = vmatprep.subr.mxu0 0.0
        %1200 = vmatpush1.msra.mxu0 0.0
        %1201 = vmatprep.subr.mxu0 0.0
        %1202 = vmatpush1.msra.mxu0 0.0
        %1203 = vmatprep.mubr.f32.mxu0 0.0
        %1204 = vmatmul.mubr.f32.gmra.mrb[0].mxu0 %v1006
        %v1205 = vpop.f32.mrb[0].mxu0
        %v1206 = vadd.f32 0.0, %v1205
        %v1207 = vpop.f32.mrb[0].mxu0
        %1208 = vmatprep.mubr.f32.mxu0 0.0
        %1209 = vmatmul.mubr.f32.gmra.mrb[0].mxu0 %v1009
        %v1210 = vpop.f32.mrb[0].mxu0
        %v1211 = vadd.f32 0.0, %v1210
        %v1212 = vpop.f32.mrb[0].mxu0
        %1213 = vdwg.mxu0
        %1214 = vmatprep.subr.mxu0 0.0
        %1215 = vmatpush1.msra.mxu0 %v1107
        %1216 = vmatprep.subr.mxu0 0.0
        %1217 = vmatpush1.msra.mxu0 %v1108
        %1218 = vmatprep.subr.mxu0 0.0
        %1219 = vmatpush1.msra.mxu0 %v1109
        %1220 = vmatprep.subr.mxu0 0.0
        %1221 = vmatpush1.msra.mxu0 %v1110
        %1222 = vmatprep.subr.mxu0 0.0
        %1223 = vmatpush1.msra.mxu0 %v1111
        %1224 = vmatprep.subr.mxu0 0.0
        %1225 = vmatpush1.msra.mxu0 %v1112
        %1226 = vmatprep.subr.mxu0 0.0
        %1227 = vmatpush1.msra.mxu0 %v1113
        %1228 = vmatprep.subr.mxu0 0.0
        %1229 = vmatpush1.msra.mxu0 %v1114
        %1230 = vmatprep.subr.mxu0 0.0
        %1231 = vmatpush1.msra.mxu0 %v1115
        %1232 = vmatprep.subr.mxu0 0.0
        %1233 = vmatpush1.msra.mxu0 %v1116
        %1234 = vmatprep.subr.mxu0 0.0
        %1235 = vmatpush1.msra.mxu0 %v1117
        %1236 = vmatprep.subr.mxu0 0.0
        %1237 = vmatpush1.msra.mxu0 %v1118
        %1238 = vmatprep.subr.mxu0 0.0
        %1239 = vmatpush1.msra.mxu0 %v1119
        %1240 = vmatprep.subr.mxu0 0.0
        %1241 = vmatpush1.msra.mxu0 %v1120
        %1242 = vmatprep.subr.mxu0 0.0
        %1243 = vmatpush1.msra.mxu0 %v1121
        %1244 = vmatprep.subr.mxu0 0.0
        %1245 = vmatpush1.msra.mxu0 %v1122
        %1246 = vmatprep.subr.mxu0 0.0
        %1247 = vmatpush1.msra.mxu0 0.0
        %1248 = vmatprep.subr.mxu0 0.0
        %1249 = vmatpush1.msra.mxu0 0.0
        %1250 = vmatprep.subr.mxu0 0.0
        %1251 = vmatpush1.msra.mxu0 0.0
        %1252 = vmatprep.subr.mxu0 0.0
        %1253 = vmatpush1.msra.mxu0 0.0
        %1254 = vmatprep.subr.mxu0 0.0
        %1255 = vmatpush1.msra.mxu0 0.0
        %1256 = vmatprep.subr.mxu0 0.0
        %1257 = vmatpush1.msra.mxu0 0.0
        %1258 = vmatprep.subr.mxu0 0.0
        %1259 = vmatpush1.msra.mxu0 0.0
        %1260 = vmatprep.subr.mxu0 0.0
        %1261 = vmatpush1.msra.mxu0 0.0
        %1262 = vmatprep.subr.mxu0 0.0
        %1263 = vmatpush1.msra.mxu0 0.0
        %1264 = vmatprep.subr.mxu0 0.0
        %1265 = vmatpush1.msra.mxu0 0.0
        %1266 = vmatprep.subr.mxu0 0.0
        %1267 = vmatpush1.msra.mxu0 0.0
        %1268 = vmatprep.subr.mxu0 0.0
        %1269 = vmatpush1.msra.mxu0 0.0
        %1270 = vmatprep.subr.mxu0 0.0
        %1271 = vmatpush1.msra.mxu0 0.0
        %1272 = vmatprep.subr.mxu0 0.0
        %1273 = vmatpush1.msra.mxu0 0.0
        %1274 = vmatprep.subr.mxu0 0.0
        %1275 = vmatpush1.msra.mxu0 0.0
        %1276 = vmatprep.subr.mxu0 0.0
        %1277 = vmatpush1.msra.mxu0 0.0
        %1278 = vmatprep.mubr.f32.mxu0 0.0
        %1279 = vmatmul.mubr.f32.gmra.mrb[0].mxu0 %v968
        %v1280 = vpop.f32.mrb[0].mxu0
        %v1281 = vadd.f32 %v1206, %v1280
        %v1282 = vpop.f32.mrb[0].mxu0
        %1283 = vmatprep.mubr.f32.mxu0 0.0
        %1284 = vmatmul.mubr.f32.gmra.mrb[0].mxu0 %v969
        %v1285 = vpop.f32.mrb[0].mxu0
        %v1286 = vadd.f32 %v1211, %v1285
        %v1287 = vpop.f32.mrb[0].mxu0
        %1288 = vdwg.mxu0
        %v1290 = vlaneseq
        %v1291 = vshrl.u32 %v1290, 7
        %v1292 = vsub.s32 0, %v1291
        %v1293 = vrot.slane %v1106, %v1292
        %v1295 = vadd.f32 %v1281, %v1293
        %v1296 = vadd.f32 %v1286, %v1293
        %v1297 = vxor.u32 %v1295, 2147483648
        %v1298 = vxor.u32 %v1296, 2147483648
        %v1299 = vmul.f32 %v1297, 1.442695
        %v1300 = vpow.pop %v1299
        %v1301 = vmul.f32 %v1298, 1.442695
        %v1302 = vpow.pop %v1301
        %v1303 = vadd.f32 %v1300, 1.0
        %v1304 = vadd.f32 %v1302, 1.0
        %v1305 = vrcp.pop %v1303
        %v1306 = vmul.f32 1.0, %v1305
        %v1307 = vrcp.pop %v1304
        %v1308 = vmul.f32 1.0, %v1307
        %v1309 = vmul.f32 %v1306, %v611
        %v1310 = vmul.f32 %v1308, %v616
        %v1311 = vld [vmem:[#allocation14] sm:$0xff]
        %v1312 = vld [vmem:[#allocation14 + $0x8] sm:$0xff]
        %v1313 = vld [vmem:[#allocation14 + $0x10] sm:$0xff]
        %v1314 = vld [vmem:[#allocation14 + $0x18] sm:$0xff]
        %v1315 = vld [vmem:[#allocation14 + $0x20] sm:$0xff]
        %v1316 = vld [vmem:[#allocation14 + $0x28] sm:$0xff]
        %v1317 = vld [vmem:[#allocation14 + $0x30] sm:$0xff]
        %v1318 = vld [vmem:[#allocation14 + $0x38] sm:$0xff]
        %v1319 = vld [vmem:[#allocation14 + $0x40] sm:$0xff]
        %v1320 = vld [vmem:[#allocation14 + $0x48] sm:$0xff]
        %v1321 = vld [vmem:[#allocation14 + $0x50] sm:$0xff]
        %v1322 = vld [vmem:[#allocation14 + $0x58] sm:$0xff]
        %v1323 = vld [vmem:[#allocation14 + $0x60] sm:$0xff]
        %v1324 = vld [vmem:[#allocation14 + $0x68] sm:$0xff]
        %v1325 = vld [vmem:[#allocation14 + $0x70] sm:$0xff]
        %v1326 = vld [vmem:[#allocation14 + $0x78] sm:$0xff]
        %v1327 = vld [vmem:[%s12] sm:$0x1]
        %v1329 = vlaneseq
        %v1330 = vshrl.u32 %v1329, 7
        %v1331 = vsub.s32 0, %v1330
        %v1332 = vrot.slane %v1327, %v1331
        %1334 = vmatprep.subr.mxu0 0.0
        %1335 = vmatpush1.msra.mxu0 %v1311
        %1336 = vmatprep.subr.mxu0 0.0
        %1337 = vmatpush1.msra.mxu0 %v1312
        %1338 = vmatprep.subr.mxu0 0.0
        %1339 = vmatpush1.msra.mxu0 %v1313
        %1340 = vmatprep.subr.mxu0 0.0
        %1341 = vmatpush1.msra.mxu0 %v1314
        %1342 = vmatprep.subr.mxu0 0.0
        %1343 = vmatpush1.msra.mxu0 %v1315
        %1344 = vmatprep.subr.mxu0 0.0
        %1345 = vmatpush1.msra.mxu0 %v1316
        %1346 = vmatprep.subr.mxu0 0.0
        %1347 = vmatpush1.msra.mxu0 %v1317
        %1348 = vmatprep.subr.mxu0 0.0
        %1349 = vmatpush1.msra.mxu0 %v1318
        %1350 = vmatprep.subr.mxu0 0.0
        %1351 = vmatpush1.msra.mxu0 %v1319
        %1352 = vmatprep.subr.mxu0 0.0
        %1353 = vmatpush1.msra.mxu0 %v1320
        %1354 = vmatprep.subr.mxu0 0.0
        %1355 = vmatpush1.msra.mxu0 %v1321
        %1356 = vmatprep.subr.mxu0 0.0
        %1357 = vmatpush1.msra.mxu0 %v1322
        %1358 = vmatprep.subr.mxu0 0.0
        %1359 = vmatpush1.msra.mxu0 %v1323
        %1360 = vmatprep.subr.mxu0 0.0
        %1361 = vmatpush1.msra.mxu0 %v1324
        %1362 = vmatprep.subr.mxu0 0.0
        %1363 = vmatpush1.msra.mxu0 %v1325
        %1364 = vmatprep.subr.mxu0 0.0
        %1365 = vmatpush1.msra.mxu0 %v1326
        %1366 = vmatprep.subr.mxu0 0.0
        %1367 = vmatpush1.msra.mxu0 0.0
        %1368 = vmatprep.subr.mxu0 0.0
        %1369 = vmatpush1.msra.mxu0 0.0
        %1370 = vmatprep.subr.mxu0 0.0
        %1371 = vmatpush1.msra.mxu0 0.0
        %1372 = vmatprep.subr.mxu0 0.0
        %1373 = vmatpush1.msra.mxu0 0.0
        %1374 = vmatprep.subr.mxu0 0.0
        %1375 = vmatpush1.msra.mxu0 0.0
        %1376 = vmatprep.subr.mxu0 0.0
        %1377 = vmatpush1.msra.mxu0 0.0
        %1378 = vmatprep.subr.mxu0 0.0
        %1379 = vmatpush1.msra.mxu0 0.0
        %1380 = vmatprep.subr.mxu0 0.0
        %1381 = vmatpush1.msra.mxu0 0.0
        %1382 = vmatprep.subr.mxu0 0.0
        %1383 = vmatpush1.msra.mxu0 0.0
        %1384 = vmatprep.subr.mxu0 0.0
        %1385 = vmatpush1.msra.mxu0 0.0
        %1386 = vmatprep.subr.mxu0 0.0
        %1387 = vmatpush1.msra.mxu0 0.0
        %1388 = vmatprep.subr.mxu0 0.0
        %1389 = vmatpush1.msra.mxu0 0.0
        %1390 = vmatprep.subr.mxu0 0.0
        %1391 = vmatpush1.msra.mxu0 0.0
        %1392 = vmatprep.subr.mxu0 0.0
        %1393 = vmatpush1.msra.mxu0 0.0
        %1394 = vmatprep.subr.mxu0 0.0
        %1395 = vmatpush1.msra.mxu0 0.0
        %1396 = vmatprep.subr.mxu0 0.0
        %1397 = vmatpush1.msra.mxu0 0.0
        %1398 = vmatprep.mubr.f32.mxu0 0.0
        %1399 = vmatmul.mubr.f32.gmra.mrb[0].mxu0 %v1309
        %v1400 = vpop.f32.mrb[0].mxu0
        %v1401 = vadd.f32 %v1332, %v1400
        %v1402 = vpop.f32.mrb[0].mxu0
        %1403 = vmatprep.mubr.f32.mxu0 0.0
        %1404 = vmatmul.mubr.f32.gmra.mrb[0].mxu0 %v1310
        %v1405 = vpop.f32.mrb[0].mxu0
        %v1406 = vadd.f32 %v1332, %v1405
        %v1407 = vpop.f32.mrb[0].mxu0
        %1408 = vdwg.mxu0
        %v1409 = vxor.u32 %v1401, 2147483648
        %v1410 = vxor.u32 %v1406, 2147483648
        %v1411 = vmul.f32 %v1409, 1.442695
        %v1412 = vpow.pop %v1411
        %v1413 = vmul.f32 %v1410, 1.442695
        %v1414 = vpow.pop %v1413
        %v1415 = vadd.f32 %v1412, 1.0
        %v1416 = vadd.f32 %v1414, 1.0
        %v1417 = vrcp.pop %v1415
        %v1418 = vmul.f32 1.0, %v1417
        %v1419 = vrcp.pop %v1416
        %v1420 = vmul.f32 1.0, %v1419
        %1421 = vst [vmem:[%s590] sm:$0xff] %v1418
        %1422 = vst [vmem:[%s590 + $0x8] sm:$0xff] %v1420
        %s1423 = sand.u32 %s330, 1
        %s1424 = scalar_lea.sflag [#allocation4], %s1423
        %s1425 = sand.u32 %s330, 1
        %s1426 = smul.addr %s1425, 16
        %s1427 = scalar_lea.vmem [#allocation16], %s1426
        // Predicated region
        $region105: #{forward.1} parent=71 // pred_check
          %p1428 = pneg %p340
        $region106: #{forward.1} parent=71 // pred_check_branch
          %1430 = sbr.rel (%p1428) target = $region108
        $region107: #{forward.1} parent=71 // pred_region
          %s1432 = ssub.s32 256, 256
          %1433 = vsyncadd %s1424, %s1432
          %s1434 = smul.addr %s34, 2
          %s1435 = smul.addr %s1434, 128
          %s1436 = scalar_lea.hbm %s13, %s1435
          %s1437 = sshll.u32 %s1427, 4
          %s1438 = int_to_ptr.vmem [resolvable:$true] %s1437
          %1443 = dma.vmem_to_hbm [thread:$0]  %s1438, 256, %s1436, %s1424, 128, 128, 8
        $region108: #{forward.1} parent=71 // pred_fallthru
          _
      $region72: #{forward.1} parent=5 // pred_fallthru
        _
      %p1444 = scmp.le.s32.totalorder 2, %s29
      // Predicated region
      $region109: #{forward.1} parent=5 // pred_check
        %p1445 = pneg %p1444
      $region110: #{forward.1} parent=5 // pred_check_branch
        %1447 = sbr.rel (%p1445) target = $region112
      $region111: #{forward.1} parent=5 // pred_region
        %s1448 = ssub.s32 %s29, 2
        // Predicated region
        $region113: #{forward.1} parent=111 // pred_check
          %p1449 = pneg %p346
        $region114: #{forward.1} parent=111 // pred_check_branch
          %1451 = sbr.rel (%p1449) target = $region116
        $region115: #{forward.1} parent=111 // pred_region
          %s1452 = sand.u32 %s331, 1
          %s1453 = scalar_lea.sflag [#allocation4], %s1452
          %s1454 = sand.u32 %s331, 1
          %s1455 = smul.addr %s1454, 16
          %s1456 = scalar_lea.vmem [#allocation16], %s1455
          %1457 = dma.done %s1453, 256
        $region116: #{forward.1} parent=111 // pred_fallthru
          _
      $region112: #{forward.1} parent=5 // pred_fallthru
        _
    $region6: #{forward.1} parent=1 // loop_footer
      %s33 = sadd.s32 1, %s29
    $region7: #{forward.1} parent=1 // loop_footer_branch
      %28 = sbr.rel target = $region3
    $region8: #{forward.1} parent=1 // loop_exit
      _
    %1458 = vsyncpa [#allocation3], 1
    %s1459 = scalar_lea.sflag [#allocation3], 1
    %1460 = vsyncpa %s1459, 1
    %1461 = vsyncpa [#allocation6], 1
    %1462 = vsyncpa [#allocation9], 1
    %1463 = vsyncpa [#allocation12], 1
    %1464 = vsyncpa [#allocation15], 1
    %1465 = vsyncpa [#allocation4], 1
    %s1466 = scalar_lea.sflag [#allocation4], 1
    %1467 = vsyncpa %s1466, 1

</llo_original>
